<compile_context>
chip_gen: v7x
topology: tpu7x:2x2x1
jax: 0.10.0
libtpu: 0.0.40
codegen_flags: <defaults>
</compile_context>

<pallas_src>
import functools

import jax
import jax.numpy as jnp
from jax import lax
from jax.experimental import pallas as pl
from jax.experimental.pallas import tpu as pltpu

LEAKY_SLOPE = 0.01   # nn.LeakyReLU default
BN_EPS = 1e-5        # nn.BatchNorm2d default
LANE = 128           # TPU lane width


def _round_up(x, m):
    return (x + m - 1) // m * m


def _tile(total, target, mult=1):
    """Largest divisor of `total` that is <= target and a multiple of `mult`.
    Falls back to `total` (a single full-extent block is always legal)."""
    for t in range(min(total, target), 0, -1):
        if total % t == 0 and t % mult == 0:
            return t
    return total


# ---------------------------------------------------------------------------
# Pallas kernels
# ---------------------------------------------------------------------------
def _maxpool_kernel(x_ref, o_ref):
    # x: (TR, 2, Wp, 2*C)  = (row tile, h-parity, pooled width, w-parity*channels)
    x = x_ref[...]
    c = o_ref.shape[-1]
    v = jnp.maximum(x[:, 0], x[:, 1])            # vertical max    -> (TR, Wp, 2C)
    p = jnp.maximum(v[..., :c], v[..., c:])      # horizontal max  -> (TR, Wp, C)
    o_ref[...] = p.astype(o_ref.dtype)


def _conv3x3_stats_kernel(ya_ref, yb0_ref, yb1_ref, w_ref, z_ref, s_ref):
    # ya:  (1, TH, Wp+2, Cin_p)  padded rows [i*TH, i*TH+TH)
    # yb0: (1, 1,  Wp+2, Cin_p)  halo row i*TH+TH
    # yb1: (1, 1,  Wp+2, Cin_p)  halo row i*TH+TH+1
    # w:   (9, Cin_p, Cout_p)    tap index = dy*3+dx
    # z:   (TH*Wp, Cout_p)       conv output (no bias: it cancels in train-mode BN)
    # s:   (1, 2, Cout_p)        per-tile partial [sum(z), sum(z*z)]
    th = ya_ref.shape[1]
    wp = ya_ref.shape[2] - 2
    cin = ya_ref.shape[3]
    cout = z_ref.shape[-1]

    # Assemble the haloed window once (leading-dim concat: cheap).
    win = jnp.concatenate([ya_ref[0], yb0_ref[0], yb1_ref[0]], axis=0)  # (TH+2, Wp+2, Cin_p)

    acc = jnp.zeros((th * wp, cout), jnp.float32)
    for dy in range(3):
        for dx in range(3):
            patch = win[dy:dy + th, dx:dx + wp, :]            # (TH, Wp, Cin_p)
            # Route the (TH, Wp, C) -> (TH*Wp, C) merge through f32 (tile-trivial relayout,
            # exact for bf16 values), then feed the MXU in the compute dtype.
            lhs = patch.astype(jnp.float32).reshape(th * wp, cin).astype(w_ref.dtype)
            acc = acc + jnp.dot(lhs, w_ref[dy * 3 + dx],
                                preferred_element_type=jnp.float32)

    z_ref[...] = acc.astype(z_ref.dtype)
    zs = jnp.sum(acc, axis=0, keepdims=True)                  # (1, Cout_p)
    z2 = jnp.sum(acc * acc, axis=0, keepdims=True)            # (1, Cout_p)
    s_ref[0] = jnp.concatenate([zs, z2], axis=0)              # (2, Cout_p)


def _bn_act_kernel(z_ref, sc_ref, sh_ref, o_ref):
    # y = z*scale + shift ; LeakyReLU
    z = z_ref[...].astype(jnp.float32)
    y = z * sc_ref[...] + sh_ref[...]
    o_ref[...] = jnp.where(y >= 0.0, y, LEAKY_SLOPE * y).astype(o_ref.dtype)


# ---------------------------------------------------------------------------
# Wrappers
# ---------------------------------------------------------------------------
def maxpool2x2(x_nhwc, out_dtype):
    n, h, w, c = x_nhwc.shape
    hp, wp = h // 2, w // 2
    xr = x_nhwc.reshape(n * hp, 2, wp, 2 * c)                 # free reshape (no copy)
    tr = _tile(n * hp, 256)
    pooled = pl.pallas_call(
        _maxpool_kernel,
        grid_spec=pltpu.PrefetchScalarGridSpec(
            num_scalar_prefetch=0,
            grid=((n * hp) // tr,),
            in_specs=[pl.BlockSpec((tr, 2, wp, 2 * c), lambda i: (i, 0, 0, 0))],
            out_specs=pl.BlockSpec((tr, wp, c), lambda i: (i, 0, 0)),
        ),
        out_shape=jax.ShapeDtypeStruct((n * hp, wp, c), out_dtype),
        compiler_params=pltpu.CompilerParams(dimension_semantics=("parallel",)),
    )(xr)
    return pooled.reshape(n, hp, wp, c)


def _prep_weight(w_oihw, cin_p, cout_p, dtype):
    co, ci, kh, kw = w_oihw.shape
    w = jnp.transpose(w_oihw, (2, 3, 1, 0))                   # (3, 3, Cin, Cout)
    w = jnp.pad(w, ((0, 0), (0, 0), (0, cin_p - ci), (0, cout_p - co)))
    return w.reshape(kh * kw, cin_p, cout_p).astype(dtype)


def _conv_bn_lrelu(ypad, w_oihw, gamma, beta, compute_dtype, out_dtype):
    """ypad: (N, Hp+2, Wp+2, Cin_p) zero-padded, channel-padded `compute_dtype` input.
    Returns the post-BN / LeakyReLU activation, shape (N*Hp*Wp, Cout_p)."""
    n, hp2, wp2, cin_p = ypad.shape
    hp, wp = hp2 - 2, wp2 - 2
    cout = w_oihw.shape[0]
    cout_p = _round_up(cout, LANE)
    w9 = _prep_weight(w_oihw, cin_p, cout_p, compute_dtype)

    th = _tile(hp, max(1, 512 // max(wp, 1)))                 # output rows per tile
    nb = hp // th
    r = n * hp * wp

    # ---- pass 1: conv (9 accumulated MXU matmuls) + per-tile partial BN stats ----
    z, stats = pl.pallas_call(
        _conv3x3_stats_kernel,
        grid_spec=pltpu.PrefetchScalarGridSpec(
            num_scalar_prefetch=0,
            grid=(n, nb),
            in_specs=[
                pl.BlockSpec((1, th, wp2, cin_p), lambda b, i: (b, i, 0, 0)),
                pl.BlockSpec((1, 1, wp2, cin_p), lambda b, i: (b, i * th + th, 0, 0)),
                pl.BlockSpec((1, 1, wp2, cin_p), lambda b, i: (b, i * th + th + 1, 0, 0)),
                pl.BlockSpec((9, cin_p, cout_p), lambda b, i: (0, 0, 0)),  # stays resident
            ],
            out_specs=[
                pl.BlockSpec((th * wp, cout_p), lambda b, i: (b * nb + i, 0)),
                pl.BlockSpec((1, 2, cout_p), lambda b, i: (b * nb + i, 0, 0)),
            ],
        ),
        out_shape=(
            jax.ShapeDtypeStruct((r, cout_p), jnp.float32),    # pre-BN z kept in f32
            jax.ShapeDtypeStruct((n * nb, 2, cout_p), jnp.float32),
        ),
        compiler_params=pltpu.CompilerParams(
            dimension_semantics=("parallel", "parallel"),
            vmem_limit_bytes=32 * 1024 * 1024,                 # safe on v5e/v6e/v7x
        ),
    )(ypad, ypad, ypad, w9)

    # ---- finalize batch statistics (tiny, plain JAX) ----
    s = jnp.sum(stats, axis=0)                                 # (2, Cout_p)
    mu = s[0] / r
    var = jnp.maximum(s[1] / r - mu * mu, 0.0)                 # biased var (torch BN train)
    g = jnp.pad(gamma.astype(jnp.float32), (0, cout_p - cout))
    bb = jnp.pad(beta.astype(jnp.float32), (0, cout_p - cout))
    scale = g * lax.rsqrt(var + BN_EPS)
    shift = bb - mu * scale

    # ---- pass 2: normalize + LeakyReLU, row-tiled, lane-dense stores ----
    trb = _tile(r, 2048, mult=8)
    act = pl.pallas_call(
        _bn_act_kernel,
        grid_spec=pltpu.PrefetchScalarGridSpec(
            num_scalar_prefetch=0,
            grid=(r // trb,),
            in_specs=[
                pl.BlockSpec((trb, cout_p), lambda i: (i, 0)),
                pl.BlockSpec((1, cout_p), lambda i: (0, 0)),
                pl.BlockSpec((1, cout_p), lambda i: (0, 0)),
            ],
            out_specs=pl.BlockSpec((trb, cout_p), lambda i: (i, 0)),
        ),
        out_shape=jax.ShapeDtypeStruct((r, cout_p), out_dtype),
        compiler_params=pltpu.CompilerParams(dimension_semantics=("parallel",)),
    )(z, scale.reshape(1, cout_p), shift.reshape(1, cout_p))
    return act


@functools.partial(jax.jit, static_argnames=("compute_dtype",))
def down_block_forward(x_nchw, p, compute_dtype=jnp.bfloat16):
    """DownBlock.forward: NCHW in, NCHW out (out_channels, H/2, W/2)."""
    n, cin, h, w = x_nchw.shape
    assert h % 2 == 0 and w % 2 == 0
    hp, wp = h // 2, w // 2
    cin_p = _round_up(cin, LANE)
    cout = p["w1"].shape[0]
    cout_p = _round_up(cout, LANE)

    x = jnp.transpose(x_nchw, (0, 2, 3, 1))                    # NCHW -> NHWC
    pooled = maxpool2x2(x, compute_dtype)                      # (N, Hp, Wp, Cin)
    # zero-pad H/W for the 3x3 conv and pad channels to a lane-dense multiple of 128
    y1 = jnp.pad(pooled, ((0, 0), (1, 1), (1, 1), (0, cin_p - cin)))

    # NOTE: conv biases (p["b1"], p["b2"]) shift z and its batch mean equally, so they
    # cancel exactly inside train-mode BatchNorm and are not applied here.
    a1 = _conv_bn_lrelu(y1, p["w1"], p["g1"], p["be1"], compute_dtype,
                        out_dtype=compute_dtype)               # (N*Hp*Wp, Cout_p)
    # TODO(synk): nn.Dropout(dropout_p) between the conv layers is identity here
    # (dropout_p = 0.0); a stochastic mask would be fused into _bn_act_kernel via
    # pltpu.prng_random_bits if needed.
    y2 = jnp.pad(a1.reshape(n, hp, wp, cout_p), ((0, 0), (1, 1), (1, 1), (0, 0)))
    a2 = _conv_bn_lrelu(y2, p["w2"], p["g2"], p["be2"], compute_dtype,
                        out_dtype=jnp.float32)                 # (N*Hp*Wp, Cout_p) f32
    out = a2.reshape(n, hp, wp, cout_p)[..., :cout]
    return jnp.transpose(out, (0, 3, 1, 2))                    # NHWC -> NCHW


# ---------------------------------------------------------------------------
# Pure-JAX reference (for correctness check)
# ---------------------------------------------------------------------------
def _reference(x, p, compute_dtype=jnp.float32):
    cd = compute_dtype
    y = lax.reduce_window(x, -jnp.inf, lax.max, (1, 1, 2, 2), (1, 1, 2, 2), "VALID")
    y = y.astype(cd)

    def conv_bn(y, w, b, g, be):
        z = lax.conv_general_dilated(y, w.astype(cd), (1, 1), ((1, 1), (1, 1)),
                                     dimension_numbers=("NCHW", "OIHW", "NCHW"),
                                     preferred_element_type=jnp.float32)
        z = z + b[None, :, None, None]
        mu = jnp.mean(z, axis=(0, 2, 3), keepdims=True)
        var = jnp.mean((z - mu) ** 2, axis=(0, 2, 3), keepdims=True)
        zz = (z - mu) * lax.rsqrt(var + BN_EPS) * g[None, :, None, None] + be[None, :, None, None]
        return jnp.where(zz >= 0, zz, LEAKY_SLOPE * zz)

    a1 = conv_bn(y, p["w1"], p["b1"], p["g1"], p["be1"]).astype(cd)
    a2 = conv_bn(a1, p["w2"], p["b2"], p["g2"], p["be2"])
    return a2.astype(jnp.float32)


# ---------------------------------------------------------------------------
if __name__ == "__main__":
    key = jax.random.PRNGKey(0)
    ks = jax.random.split(key, 10)

    N, Cin, Cout, H, W = 2, 4, 8, 16, 16
    x = jax.random.normal(ks[0], (N, Cin, H, W), jnp.float32)

    params = dict(
        w1=0.2 * jax.random.normal(ks[1], (Cout, Cin, 3, 3), jnp.float32),
        b1=0.1 * jax.random.normal(ks[2], (Cout,), jnp.float32),
        g1=1.0 + 0.1 * jax.random.normal(ks[3], (Cout,), jnp.float32),
        be1=0.1 * jax.random.normal(ks[4], (Cout,), jnp.float32),
        w2=0.2 * jax.random.normal(ks[5], (Cout, Cout, 3, 3), jnp.float32),
        b2=0.1 * jax.random.normal(ks[6], (Cout,), jnp.float32),
        g2=1.0 + 0.1 * jax.random.normal(ks[7], (Cout,), jnp.float32),
        be2=0.1 * jax.random.normal(ks[8], (Cout,), jnp.float32),
    )

    # 1) exactness: f32 compute path vs. f32 reference (reference adds the conv bias,
    #    confirming the bias-cancellation argument).
    out32 = jax.block_until_ready(down_block_forward(x, params, compute_dtype=jnp.float32))
    ref32 = jax.block_until_ready(_reference(x, params, jnp.float32))
    assert out32.shape == (N, Cout, H // 2, W // 2), out32.shape
    err32 = float(jnp.max(jnp.abs(out32 - ref32)))
    assert err32 < 5e-4, f"f32 max abs err = {err32}"

    # 2) performance config: bf16 MXU inputs / bf16 inter-stage activations
    #    (f32 accumulation, f32 BN stats), checked against a bf16-quantized reference.
    outbf = jax.block_until_ready(down_block_forward(x, params, compute_dtype=jnp.bfloat16))
    refbf = jax.block_until_ready(_reference(x, params, jnp.bfloat16))
    errbf = float(jnp.max(jnp.abs(outbf - refbf)))
    assert errbf < 3e-2, f"bf16 max abs err = {errbf}"

    print("KERNEL_OK")
</pallas_src>

<mosaic_0001>
module attributes {stable_mosaic.version = 11 : i64} {
  func.func @_maxpool_kernel(%arg0: i32, %arg1: memref<16x2x8x8xf32, #tpu.memory_space<vmem>>, %arg2: memref<16x8x4xf32, #tpu.memory_space<vmem>>) attributes {dimension_semantics = [#tpu.dimension_semantics<parallel>], iteration_bounds = array<i64: 1>, scalar_prefetch = 0 : i64, scratch_operands = 0 : i64, tpu.core_type = #tpu.core_type<tc>, window_params = [{transform_indices = @transform_0, window_bounds = array<i64: 16, 2, 8, 8>}, {transform_indices = @transform_1, window_bounds = array<i64: 16, 8, 4>}]} {
    %c0 = arith.constant 0 : index
    %c0_0 = arith.constant 0 : index
    %c0_1 = arith.constant 0 : index
    %c0_2 = arith.constant 0 : index
    %0 = vector.load %arg1[%c0, %c0_0, %c0_1, %c0_2] : memref<16x2x8x8xf32, #tpu.memory_space<vmem>>, vector<16x2x8x8xf32>
    %1 = vector.extract_strided_slice %0 {offsets = [0, 0, 0, 0], sizes = [16, 1, 8, 8], strides = [1, 1, 1, 1]} : vector<16x2x8x8xf32> to vector<16x1x8x8xf32>
    %2 = vector.shape_cast %1 : vector<16x1x8x8xf32> to vector<16x8x8xf32>
    %3 = vector.extract_strided_slice %0 {offsets = [0, 1, 0, 0], sizes = [16, 1, 8, 8], strides = [1, 1, 1, 1]} : vector<16x2x8x8xf32> to vector<16x1x8x8xf32>
    %4 = vector.shape_cast %3 : vector<16x1x8x8xf32> to vector<16x8x8xf32>
    %5 = arith.maximumf %2, %4 : vector<16x8x8xf32>
    %6 = vector.extract_strided_slice %5 {offsets = [0, 0, 0], sizes = [16, 8, 4], strides = [1, 1, 1]} : vector<16x8x8xf32> to vector<16x8x4xf32>
    %7 = vector.extract_strided_slice %5 {offsets = [0, 0, 4], sizes = [16, 8, 4], strides = [1, 1, 1]} : vector<16x8x8xf32> to vector<16x8x4xf32>
    %8 = arith.maximumf %6, %7 : vector<16x8x4xf32>
    %c0_3 = arith.constant 0 : index
    %c0_4 = arith.constant 0 : index
    %c0_5 = arith.constant 0 : index
    %9 = vector.load %arg2[%c0_3, %c0_4, %c0_5] : memref<16x8x4xf32, #tpu.memory_space<vmem>>, vector<16x8x4xf32>
    tpu.vector_store %arg2[%c0_3, %c0_4, %c0_5], %8 {strides = array<i32>} : memref<16x8x4xf32, #tpu.memory_space<vmem>>, vector<16x8x4xf32>,
    return
  }
  func.func @transform_0(%arg0: i32) -> (i32, i32, i32, i32) {
    %c0_i32 = arith.constant 0 : i32
    %c0_i32_0 = arith.constant 0 : i32
    %c0_i32_1 = arith.constant 0 : i32
    %c0_i32_2 = arith.constant 0 : i32
    return %arg0, %c0_i32, %c0_i32_0, %c0_i32_1 : i32, i32, i32, i32
  }
  func.func @transform_1(%arg0: i32) -> (i32, i32, i32) {
    %c0_i32 = arith.constant 0 : i32
    %c0_i32_0 = arith.constant 0 : i32
    %c0_i32_1 = arith.constant 0 : i32
    return %arg0, %c0_i32, %c0_i32_0 : i32, i32, i32
  }
}

module attributes {stable_mosaic.version = 11 : i64} {
  func.func @_bn_act_kernel(%arg0: i32, %arg1: memref<128x128xf32, #tpu.memory_space<vmem>>, %arg2: memref<1x128xf32, #tpu.memory_space<vmem>>, %arg3: memref<1x128xf32, #tpu.memory_space<vmem>>, %arg4: memref<128x128xf32, #tpu.memory_space<vmem>>) attributes {dimension_semantics = [#tpu.dimension_semantics<parallel>], iteration_bounds = array<i64: 1>, scalar_prefetch = 0 : i64, scratch_operands = 0 : i64, tpu.core_type = #tpu.core_type<tc>, window_params = [{transform_indices = @transform_0, window_bounds = array<i64: 128, 128>}, {pipeline_mode = #tpu.pipeline_mode<synchronous>, transform_indices = @transform_1, window_bounds = array<i64: 1, 128>}, {pipeline_mode = #tpu.pipeline_mode<synchronous>, transform_indices = @transform_2, window_bounds = array<i64: 1, 128>}, {transform_indices = @transform_3, window_bounds = array<i64: 128, 128>}]} {
    %c0 = arith.constant 0 : index
    %c0_0 = arith.constant 0 : index
    %0 = vector.load %arg1[%c0, %c0_0] : memref<128x128xf32, #tpu.memory_space<vmem>>, vector<128x128xf32>
    %c0_1 = arith.constant 0 : index
    %c0_2 = arith.constant 0 : index
    %1 = vector.load %arg2[%c0_1, %c0_2] : memref<1x128xf32, #tpu.memory_space<vmem>>, vector<1x128xf32>
    %2 = vector.broadcast %1 : vector<1x128xf32> to vector<128x128xf32>
    %3 = arith.mulf %0, %2 : vector<128x128xf32>
    %c0_3 = arith.constant 0 : index
    %c0_4 = arith.constant 0 : index
    %4 = vector.load %arg3[%c0_3, %c0_4] : memref<1x128xf32, #tpu.memory_space<vmem>>, vector<1x128xf32>
    %5 = vector.broadcast %4 : vector<1x128xf32> to vector<128x128xf32>
    %6 = arith.addf %3, %5 : vector<128x128xf32>
    %cst = arith.constant 0.000000e+00 : f32
    %7 = vector.broadcast %cst : f32 to vector<128x128xf32>
    %8 = arith.cmpf oge, %6, %7 : vector<128x128xf32>
    %cst_5 = arith.constant 0.00999999977 : f32
    %9 = vector.broadcast %cst_5 : f32 to vector<128x128xf32>
    %10 = arith.mulf %9, %6 : vector<128x128xf32>
    %11 = arith.select %8, %6, %10 : vector<128x128xi1>, vector<128x128xf32>
    %c0_6 = arith.constant 0 : index
    %c0_7 = arith.constant 0 : index
    %12 = vector.load %arg4[%c0_6, %c0_7] : memref<128x128xf32, #tpu.memory_space<vmem>>, vector<128x128xf32>
    tpu.vector_store %arg4[%c0_6, %c0_7], %11 {strides = array<i32>} : memref<128x128xf32, #tpu.memory_space<vmem>>, vector<128x128xf32>,
    return
  }
  func.func @transform_0(%arg0: i32) -> (i32, i32) {
    %c0_i32 = arith.constant 0 : i32
    %c0_i32_0 = arith.constant 0 : i32
    return %arg0, %c0_i32 : i32, i32
  }
  func.func @transform_1(%arg0: i32) -> (i32, i32) {
    %c0_i32 = arith.constant 0 : i32
    %c0_i32_0 = arith.constant 0 : i32
    %c0_i32_1 = arith.constant 0 : i32
    return %c0_i32, %c0_i32_0 : i32, i32
  }
  func.func @transform_2(%arg0: i32) -> (i32, i32) {
    %c0_i32 = arith.constant 0 : i32
    %c0_i32_0 = arith.constant 0 : i32
    %c0_i32_1 = arith.constant 0 : i32
    return %c0_i32, %c0_i32_0 : i32, i32
  }
  func.func @transform_3(%arg0: i32) -> (i32, i32) {
    %c0_i32 = arith.constant 0 : i32
    %c0_i32_0 = arith.constant 0 : i32
    return %arg0, %c0_i32 : i32, i32
  }
}

module attributes {stable_mosaic.version = 11 : i64} {
  func.func @_conv3x3_stats_kernel(%arg0: i32, %arg1: i32, %arg2: memref<1x8x10x128xf32, #tpu.memory_space<vmem>>, %arg3: memref<1x1x10x128xf32, #tpu.memory_space<vmem>>, %arg4: memref<1x1x10x128xf32, #tpu.memory_space<vmem>>, %arg5: memref<9x128x128xf32, #tpu.memory_space<vmem>>, %arg6: memref<64x128xf32, #tpu.memory_space<vmem>>, %arg7: memref<1x2x128xf32, #tpu.memory_space<vmem>>) attributes {dimension_semantics = [#tpu.dimension_semantics<parallel>, #tpu.dimension_semantics<parallel>], iteration_bounds = array<i64: 2, 1>, scalar_prefetch = 0 : i64, scratch_operands = 0 : i64, tpu.core_type = #tpu.core_type<tc>, window_params = [{transform_indices = @transform_0, window_bounds = array<i64: 1, 8, 10, 128>}, {transform_indices = @transform_1, window_bounds = array<i64: 1, 1, 10, 128>}, {transform_indices = @transform_2, window_bounds = array<i64: 1, 1, 10, 128>}, {pipeline_mode = #tpu.pipeline_mode<synchronous>, transform_indices = @transform_3, window_bounds = array<i64: 9, 128, 128>}, {transform_indices = @transform_4, window_bounds = array<i64: 64, 128>}, {transform_indices = @transform_5, window_bounds = array<i64: 1, 2, 128>}]} {
    %c0 = arith.constant 0 : index
    %c0_0 = arith.constant 0 : index
    %c0_1 = arith.constant 0 : index
    %c0_2 = arith.constant 0 : index
    %0 = vector.load %arg2[%c0, %c0_0, %c0_1, %c0_2] : memref<1x8x10x128xf32, #tpu.memory_space<vmem>>, vector<1x8x10x128xf32>
    %1 = vector.shape_cast %0 : vector<1x8x10x128xf32> to vector<8x10x128xf32>
    %c0_3 = arith.constant 0 : index
    %c0_4 = arith.constant 0 : index
    %c0_5 = arith.constant 0 : index
    %c0_6 = arith.constant 0 : index
    %2 = vector.load %arg3[%c0_3, %c0_4, %c0_5, %c0_6] : memref<1x1x10x128xf32, #tpu.memory_space<vmem>>, vector<1x1x10x128xf32>
    %3 = vector.shape_cast %2 : vector<1x1x10x128xf32> to vector<1x10x128xf32>
    %c0_7 = arith.constant 0 : index
    %c0_8 = arith.constant 0 : index
    %c0_9 = arith.constant 0 : index
    %c0_10 = arith.constant 0 : index
    %4 = vector.load %arg4[%c0_7, %c0_8, %c0_9, %c0_10] : memref<1x1x10x128xf32, #tpu.memory_space<vmem>>, vector<1x1x10x128xf32>
    %5 = vector.shape_cast %4 : vector<1x1x10x128xf32> to vector<1x10x128xf32>
    %6 = tpu.concatenate %1, %3, %5 in 0 : vector<8x10x128xf32>, vector<1x10x128xf32>, vector<1x10x128xf32> -> vector<10x10x128xf32>
    %cst = arith.constant 0.000000e+00 : f32
    %7 = vector.broadcast %cst : f32 to vector<64x128xf32>
    %8 = vector.extract_strided_slice %6 {offsets = [0, 0, 0], sizes = [8, 8, 128], strides = [1, 1, 1]} : vector<10x10x128xf32> to vector<8x8x128xf32>
    %9 = vector.shape_cast %8 : vector<8x8x128xf32> to vector<64x128xf32>
    %c0_11 = arith.constant 0 : index
    %c0_12 = arith.constant 0 : index
    %c0_13 = arith.constant 0 : index
    %10 = vector.load %arg5[%c0_11, %c0_12, %c0_13] : memref<9x128x128xf32, #tpu.memory_space<vmem>>, vector<1x128x128xf32>
    %11 = vector.shape_cast %10 : vector<1x128x128xf32> to vector<128x128xf32>
    %cst_14 = arith.constant dense<0.000000e+00> : vector<64x128xf32>
    %12 = tpu.matmul %9, %11, %cst_14 {dimension_numbers = #tpu.dot_dimension_numbers<[1], [0], [0], [1], [0, 0, 1, 1], [], []>} : vector<64x128xf32>, vector<128x128xf32>, vector<64x128xf32> -> vector<64x128xf32>
    %13 = arith.addf %7, %12 : vector<64x128xf32>
    %14 = vector.extract_strided_slice %6 {offsets = [0, 1, 0], sizes = [8, 8, 128], strides = [1, 1, 1]} : vector<10x10x128xf32> to vector<8x8x128xf32>
    %15 = vector.shape_cast %14 : vector<8x8x128xf32> to vector<64x128xf32>
    %c1 = arith.constant 1 : index
    %c0_15 = arith.constant 0 : index
    %c0_16 = arith.constant 0 : index
    %16 = vector.load %arg5[%c1, %c0_15, %c0_16] : memref<9x128x128xf32, #tpu.memory_space<vmem>>, vector<1x128x128xf32>
    %17 = vector.shape_cast %16 : vector<1x128x128xf32> to vector<128x128xf32>
    %cst_17 = arith.constant dense<0.000000e+00> : vector<64x128xf32>
    %18 = tpu.matmul %15, %17, %cst_17 {dimension_numbers = #tpu.dot_dimension_numbers<[1], [0], [0], [1], [0, 0, 1, 1], [], []>} : vector<64x128xf32>, vector<128x128xf32>, vector<64x128xf32> -> vector<64x128xf32>
    %19 = arith.addf %13, %18 : vector<64x128xf32>
    %20 = vector.extract_strided_slice %6 {offsets = [0, 2, 0], sizes = [8, 8, 128], strides = [1, 1, 1]} : vector<10x10x128xf32> to vector<8x8x128xf32>
    %21 = vector.shape_cast %20 : vector<8x8x128xf32> to vector<64x128xf32>
    %c2 = arith.constant 2 : index
    %c0_18 = arith.constant 0 : index
    %c0_19 = arith.constant 0 : index
    %22 = vector.load %arg5[%c2, %c0_18, %c0_19] : memref<9x128x128xf32, #tpu.memory_space<vmem>>, vector<1x128x128xf32>
    %23 = vector.shape_cast %22 : vector<1x128x128xf32> to vector<128x128xf32>
    %cst_20 = arith.constant dense<0.000000e+00> : vector<64x128xf32>
    %24 = tpu.matmul %21, %23, %cst_20 {dimension_numbers = #tpu.dot_dimension_numbers<[1], [0], [0], [1], [0, 0, 1, 1], [], []>} : vector<64x128xf32>, vector<128x128xf32>, vector<64x128xf32> -> vector<64x128xf32>
    %25 = arith.addf %19, %24 : vector<64x128xf32>
    %26 = vector.extract_strided_slice %6 {offsets = [1, 0, 0], sizes = [8, 8, 128], strides = [1, 1, 1]} : vector<10x10x128xf32> to vector<8x8x128xf32>
    %27 = vector.shape_cast %26 : vector<8x8x128xf32> to vector<64x128xf32>
    %c3 = arith.constant 3 : index
    %c0_21 = arith.constant 0 : index
    %c0_22 = arith.constant 0 : index
    %28 = vector.load %arg5[%c3, %c0_21, %c0_22] : memref<9x128x128xf32, #tpu.memory_space<vmem>>, vector<1x128x128xf32>
    %29 = vector.shape_cast %28 : vector<1x128x128xf32> to vector<128x128xf32>
    %cst_23 = arith.constant dense<0.000000e+00> : vector<64x128xf32>
    %30 = tpu.matmul %27, %29, %cst_23 {dimension_numbers = #tpu.dot_dimension_numbers<[1], [0], [0], [1], [0, 0, 1, 1], [], []>} : vector<64x128xf32>, vector<128x128xf32>, vector<64x128xf32> -> vector<64x128xf32>
    %31 = arith.addf %25, %30 : vector<64x128xf32>
    %32 = vector.extract_strided_slice %6 {offsets = [1, 1, 0], sizes = [8, 8, 128], strides = [1, 1, 1]} : vector<10x10x128xf32> to vector<8x8x128xf32>
    %33 = vector.shape_cast %32 : vector<8x8x128xf32> to vector<64x128xf32>
    %c4 = arith.constant 4 : index
    %c0_24 = arith.constant 0 : index
    %c0_25 = arith.constant 0 : index
    %34 = vector.load %arg5[%c4, %c0_24, %c0_25] : memref<9x128x128xf32, #tpu.memory_space<vmem>>, vector<1x128x128xf32>
    %35 = vector.shape_cast %34 : vector<1x128x128xf32> to vector<128x128xf32>
    %cst_26 = arith.constant dense<0.000000e+00> : vector<64x128xf32>
    %36 = tpu.matmul %33, %35, %cst_26 {dimension_numbers = #tpu.dot_dimension_numbers<[1], [0], [0], [1], [0, 0, 1, 1], [], []>} : vector<64x128xf32>, vector<128x128xf32>, vector<64x128xf32> -> vector<64x128xf32>
    %37 = arith.addf %31, %36 : vector<64x128xf32>
    %38 = vector.extract_strided_slice %6 {offsets = [1, 2, 0], sizes = [8, 8, 128], strides = [1, 1, 1]} : vector<10x10x128xf32> to vector<8x8x128xf32>
    %39 = vector.shape_cast %38 : vector<8x8x128xf32> to vector<64x128xf32>
    %c5 = arith.constant 5 : index
    %c0_27 = arith.constant 0 : index
    %c0_28 = arith.constant 0 : index
    %40 = vector.load %arg5[%c5, %c0_27, %c0_28] : memref<9x128x128xf32, #tpu.memory_space<vmem>>, vector<1x128x128xf32>
    %41 = vector.shape_cast %40 : vector<1x128x128xf32> to vector<128x128xf32>
    %cst_29 = arith.constant dense<0.000000e+00> : vector<64x128xf32>
    %42 = tpu.matmul %39, %41, %cst_29 {dimension_numbers = #tpu.dot_dimension_numbers<[1], [0], [0], [1], [0, 0, 1, 1], [], []>} : vector<64x128xf32>, vector<128x128xf32>, vector<64x128xf32> -> vector<64x128xf32>
    %43 = arith.addf %37, %42 : vector<64x128xf32>
    %44 = vector.extract_strided_slice %6 {offsets = [2, 0, 0], sizes = [8, 8, 128], strides = [1, 1, 1]} : vector<10x10x128xf32> to vector<8x8x128xf32>
    %45 = vector.shape_cast %44 : vector<8x8x128xf32> to vector<64x128xf32>
    %c6 = arith.constant 6 : index
    %c0_30 = arith.constant 0 : index
    %c0_31 = arith.constant 0 : index
    %46 = vector.load %arg5[%c6, %c0_30, %c0_31] : memref<9x128x128xf32, #tpu.memory_space<vmem>>, vector<1x128x128xf32>
    %47 = vector.shape_cast %46 : vector<1x128x128xf32> to vector<128x128xf32>
    %cst_32 = arith.constant dense<0.000000e+00> : vector<64x128xf32>
    %48 = tpu.matmul %45, %47, %cst_32 {dimension_numbers = #tpu.dot_dimension_numbers<[1], [0], [0], [1], [0, 0, 1, 1], [], []>} : vector<64x128xf32>, vector<128x128xf32>, vector<64x128xf32> -> vector<64x128xf32>
    %49 = arith.addf %43, %48 : vector<64x128xf32>
    %50 = vector.extract_strided_slice %6 {offsets = [2, 1, 0], sizes = [8, 8, 128], strides = [1, 1, 1]} : vector<10x10x128xf32> to vector<8x8x128xf32>
    %51 = vector.shape_cast %50 : vector<8x8x128xf32> to vector<64x128xf32>
    %c7 = arith.constant 7 : index
    %c0_33 = arith.constant 0 : index
    %c0_34 = arith.constant 0 : index
    %52 = vector.load %arg5[%c7, %c0_33, %c0_34] : memref<9x128x128xf32, #tpu.memory_space<vmem>>, vector<1x128x128xf32>
    %53 = vector.shape_cast %52 : vector<1x128x128xf32> to vector<128x128xf32>
    %cst_35 = arith.constant dense<0.000000e+00> : vector<64x128xf32>
    %54 = tpu.matmul %51, %53, %cst_35 {dimension_numbers = #tpu.dot_dimension_numbers<[1], [0], [0], [1], [0, 0, 1, 1], [], []>} : vector<64x128xf32>, vector<128x128xf32>, vector<64x128xf32> -> vector<64x128xf32>
    %55 = arith.addf %49, %54 : vector<64x128xf32>
    %56 = vector.extract_strided_slice %6 {offsets = [2, 2, 0], sizes = [8, 8, 128], strides = [1, 1, 1]} : vector<10x10x128xf32> to vector<8x8x128xf32>
    %57 = vector.shape_cast %56 : vector<8x8x128xf32> to vector<64x128xf32>
    %c8 = arith.constant 8 : index
    %c0_36 = arith.constant 0 : index
    %c0_37 = arith.constant 0 : index
    %58 = vector.load %arg5[%c8, %c0_36, %c0_37] : memref<9x128x128xf32, #tpu.memory_space<vmem>>, vector<1x128x128xf32>
    %59 = vector.shape_cast %58 : vector<1x128x128xf32> to vector<128x128xf32>
    %cst_38 = arith.constant dense<0.000000e+00> : vector<64x128xf32>
    %60 = tpu.matmul %57, %59, %cst_38 {dimension_numbers = #tpu.dot_dimension_numbers<[1], [0], [0], [1], [0, 0, 1, 1], [], []>} : vector<64x128xf32>, vector<128x128xf32>, vector<64x128xf32> -> vector<64x128xf32>
    %61 = arith.addf %55, %60 : vector<64x128xf32>
    %c0_39 = arith.constant 0 : index
    %c0_40 = arith.constant 0 : index
    %62 = vector.load %arg6[%c0_39, %c0_40] : memref<64x128xf32, #tpu.memory_space<vmem>>, vector<64x128xf32>
    tpu.vector_store %arg6[%c0_39, %c0_40], %61 {strides = array<i32>} : memref<64x128xf32, #tpu.memory_space<vmem>>, vector<64x128xf32>,
    %cst_41 = arith.constant dense<0.000000e+00> : vector<128xf32>
    %63 = vector.multi_reduction <add>, %61, %cst_41 [0] : vector<64x128xf32> to vector<128xf32>
    %64 = vector.shape_cast %63 : vector<128xf32> to vector<1x128xf32>
    %65 = arith.mulf %61, %61 : vector<64x128xf32>
    %cst_42 = arith.constant dense<0.000000e+00> : vector<128xf32>
    %66 = vector.multi_reduction <add>, %65, %cst_42 [0] : vector<64x128xf32> to vector<128xf32>
    %67 = vector.shape_cast %66 : vector<128xf32> to vector<1x128xf32>
    %68 = tpu.concatenate %64, %67 in 0 : vector<1x128xf32>, vector<1x128xf32> -> vector<2x128xf32>
    %c0_43 = arith.constant 0 : index
    %c0_44 = arith.constant 0 : index
    %c0_45 = arith.constant 0 : index
    %69 = vector.load %arg7[%c0_43, %c0_44, %c0_45] : memref<1x2x128xf32, #tpu.memory_space<vmem>>, vector<1x2x128xf32>
    %70 = vector.shape_cast %69 : vector<1x2x128xf32> to vector<2x128xf32>
    %71 = vector.shape_cast %68 : vector<2x128xf32> to vector<1x2x128xf32>
    tpu.vector_store %arg7[%c0_43, %c0_44, %c0_45], %71 {strides = array<i32>} : memref<1x2x128xf32, #tpu.memory_space<vmem>>, vector<1x2x128xf32>,
    return
  }
  func.func @transform_0(%arg0: i32, %arg1: i32) -> (i32, i32, i32, i32) {
    %c0_i32 = arith.constant 0 : i32
    %c0_i32_0 = arith.constant 0 : i32
    %c0_i32_1 = arith.constant 0 : i32
    return %arg0, %arg1, %c0_i32, %c0_i32_0 : i32, i32, i32, i32
  }
  func.func @transform_1(%arg0: i32, %arg1: i32) -> (i32, i32, i32, i32) {
    %c8_i32 = arith.constant 8 : i32
    %0 = arith.muli %arg1, %c8_i32 : i32
    %c8_i32_0 = arith.constant 8 : i32
    %1 = arith.addi %0, %c8_i32_0 : i32
    %c0_i32 = arith.constant 0 : i32
    %c0_i32_1 = arith.constant 0 : i32
    %c0_i32_2 = arith.constant 0 : i32
    return %arg0, %1, %c0_i32, %c0_i32_1 : i32, i32, i32, i32
  }
  func.func @transform_2(%arg0: i32, %arg1: i32) -> (i32, i32, i32, i32) {
    %c8_i32 = arith.constant 8 : i32
    %0 = arith.muli %arg1, %c8_i32 : i32
    %c8_i32_0 = arith.constant 8 : i32
    %1 = arith.addi %0, %c8_i32_0 : i32
    %c1_i32 = arith.constant 1 : i32
    %2 = arith.addi %1, %c1_i32 : i32
    %c0_i32 = arith.constant 0 : i32
    %c0_i32_1 = arith.constant 0 : i32
    %c0_i32_2 = arith.constant 0 : i32
    return %arg0, %2, %c0_i32, %c0_i32_1 : i32, i32, i32, i32
  }
  func.func @transform_3(%arg0: i32, %arg1: i32) -> (i32, i32, i32) {
    %c0_i32 = arith.constant 0 : i32
    %c0_i32_0 = arith.constant 0 : i32
    %c0_i32_1 = arith.constant 0 : i32
    %c0_i32_2 = arith.constant 0 : i32
    return %c0_i32, %c0_i32_0, %c0_i32_1 : i32, i32, i32
  }
  func.func @transform_4(%arg0: i32, %arg1: i32) -> (i32, i32) {
    %c1_i32 = arith.constant 1 : i32
    %0 = arith.muli %arg0, %c1_i32 : i32
    %1 = arith.addi %0, %arg1 : i32
    %c0_i32 = arith.constant 0 : i32
    %c0_i32_0 = arith.constant 0 : i32
    return %1, %c0_i32 : i32, i32
  }
  func.func @transform_5(%arg0: i32, %arg1: i32) -> (i32, i32, i32) {
    %c1_i32 = arith.constant 1 : i32
    %0 = arith.muli %arg0, %c1_i32 : i32
    %1 = arith.addi %0, %arg1 : i32
    %c0_i32 = arith.constant 0 : i32
    %c0_i32_0 = arith.constant 0 : i32
    %c0_i32_1 = arith.constant 0 : i32
    return %1, %c0_i32, %c0_i32_0 : i32, i32, i32
  }
}

</mosaic_0001>

<llo_original>
// kernel: down_block_forward.5
$region0: #{down_block_forward.5}
  #allocation0 [shape = 'u32[]', space=smem, size = 0x4, offset = 0x4, fixed_abs, tag = 'smem constant byte address 0x4 - core index']
  #allocation1 [shape = 'u32[144,128]{1,0:T(1,128)}', space=vmem, size = 0x12000, scoped, tag = 'internal scratch']
  %s0 = inlined_call_operand.vmem [shape: f32[16,2,8,8], index: 0, kind: input, shape index: {}]
  %s1 = inlined_call_operand.vmem [shape: f32[16,8,4], index: 1, kind: output, shape index: {}]
  %s2 = sld [smem:[#allocation0]]
  $region14: #{down_block_forward.5} parent=0
    _
  %s4 = ssub.s32 1, %s2
  %s5 = scalar_select 0, %s4, %s2
  // Predicated region
  $region2: #{down_block_forward.5} parent=0 // pred_check
    _
  $region3: #{down_block_forward.5} parent=0 // pred_check_branch
    %7 = sbr.rel (0) target = $region5
  $region4: #{down_block_forward.5} parent=0 // pred_region
    _
  $region5: #{down_block_forward.5} parent=0 // pred_fallthru
    _
  %v8 = vld [vmem:[%s0] sm:$0xff]
  %v9 = vld [vmem:[%s0 + $0x8] sm:$0xff]
  %v10 = vld [vmem:[%s0 + $0x10] sm:$0xff]
  %v11 = vld [vmem:[%s0 + $0x18] sm:$0xff]
  %v12 = vld [vmem:[%s0 + $0x20] sm:$0xff]
  %v13 = vld [vmem:[%s0 + $0x28] sm:$0xff]
  %v14 = vld [vmem:[%s0 + $0x30] sm:$0xff]
  %v15 = vld [vmem:[%s0 + $0x38] sm:$0xff]
  %v16 = vld [vmem:[%s0 + $0x40] sm:$0xff]
  %v17 = vld [vmem:[%s0 + $0x48] sm:$0xff]
  %v18 = vld [vmem:[%s0 + $0x50] sm:$0xff]
  %v19 = vld [vmem:[%s0 + $0x58] sm:$0xff]
  %v20 = vld [vmem:[%s0 + $0x60] sm:$0xff]
  %v21 = vld [vmem:[%s0 + $0x68] sm:$0xff]
  %v22 = vld [vmem:[%s0 + $0x70] sm:$0xff]
  %v23 = vld [vmem:[%s0 + $0x78] sm:$0xff]
  %v24 = vld [vmem:[%s0 + $0x80] sm:$0xff]
  %v25 = vld [vmem:[%s0 + $0x88] sm:$0xff]
  %v26 = vld [vmem:[%s0 + $0x90] sm:$0xff]
  %v27 = vld [vmem:[%s0 + $0x98] sm:$0xff]
  %v28 = vld [vmem:[%s0 + $0xa0] sm:$0xff]
  %v29 = vld [vmem:[%s0 + $0xa8] sm:$0xff]
  %v30 = vld [vmem:[%s0 + $0xb0] sm:$0xff]
  %v31 = vld [vmem:[%s0 + $0xb8] sm:$0xff]
  %v32 = vld [vmem:[%s0 + $0xc0] sm:$0xff]
  %v33 = vld [vmem:[%s0 + $0xc8] sm:$0xff]
  %v34 = vld [vmem:[%s0 + $0xd0] sm:$0xff]
  %v35 = vld [vmem:[%s0 + $0xd8] sm:$0xff]
  %v36 = vld [vmem:[%s0 + $0xe0] sm:$0xff]
  %v37 = vld [vmem:[%s0 + $0xe8] sm:$0xff]
  %v38 = vld [vmem:[%s0 + $0xf0] sm:$0xff]
  %v39 = vld [vmem:[%s0 + $0xf8] sm:$0xff]
  %v40 = vmax.f32 %v8, %v9
  %v41 = vmax.f32 %v10, %v11
  %v42 = vmax.f32 %v12, %v13
  %v43 = vmax.f32 %v14, %v15
  %v44 = vmax.f32 %v16, %v17
  %v45 = vmax.f32 %v18, %v19
  %v46 = vmax.f32 %v20, %v21
  %v47 = vmax.f32 %v22, %v23
  %v48 = vmax.f32 %v24, %v25
  %v49 = vmax.f32 %v26, %v27
  %v50 = vmax.f32 %v28, %v29
  %v51 = vmax.f32 %v30, %v31
  %v52 = vmax.f32 %v32, %v33
  %v53 = vmax.f32 %v34, %v35
  %v54 = vmax.f32 %v36, %v37
  %v55 = vmax.f32 %v38, %v39
  %72 = vrot.lane.b32.xlu0 %v40, 124
  %v73 = vpop.permute.xlu0 %72
  %74 = vrot.lane.b32.xlu0 %v41, 124
  %v75 = vpop.permute.xlu0 %74
  %76 = vrot.lane.b32.xlu0 %v42, 124
  %v77 = vpop.permute.xlu0 %76
  %78 = vrot.lane.b32.xlu0 %v43, 124
  %v79 = vpop.permute.xlu0 %78
  %80 = vrot.lane.b32.xlu0 %v44, 124
  %v81 = vpop.permute.xlu0 %80
  %82 = vrot.lane.b32.xlu0 %v45, 124
  %v83 = vpop.permute.xlu0 %82
  %84 = vrot.lane.b32.xlu0 %v46, 124
  %v85 = vpop.permute.xlu0 %84
  %86 = vrot.lane.b32.xlu0 %v47, 124
  %v87 = vpop.permute.xlu0 %86
  %88 = vrot.lane.b32.xlu0 %v48, 124
  %v89 = vpop.permute.xlu0 %88
  %90 = vrot.lane.b32.xlu0 %v49, 124
  %v91 = vpop.permute.xlu0 %90
  %92 = vrot.lane.b32.xlu0 %v50, 124
  %v93 = vpop.permute.xlu0 %92
  %94 = vrot.lane.b32.xlu0 %v51, 124
  %v95 = vpop.permute.xlu0 %94
  %96 = vrot.lane.b32.xlu0 %v52, 124
  %v97 = vpop.permute.xlu0 %96
  %98 = vrot.lane.b32.xlu0 %v53, 124
  %v99 = vpop.permute.xlu0 %98
  %100 = vrot.lane.b32.xlu0 %v54, 124
  %v101 = vpop.permute.xlu0 %100
  %102 = vrot.lane.b32.xlu0 %v55, 124
  %v103 = vpop.permute.xlu0 %102
  %v120 = vmax.f32 %v40, %v73
  %v121 = vmax.f32 %v41, %v75
  %v122 = vmax.f32 %v42, %v77
  %v123 = vmax.f32 %v43, %v79
  %v124 = vmax.f32 %v44, %v81
  %v125 = vmax.f32 %v45, %v83
  %v126 = vmax.f32 %v46, %v85
  %v127 = vmax.f32 %v47, %v87
  %v128 = vmax.f32 %v48, %v89
  %v129 = vmax.f32 %v49, %v91
  %v130 = vmax.f32 %v50, %v93
  %v131 = vmax.f32 %v51, %v95
  %v132 = vmax.f32 %v52, %v97
  %v133 = vmax.f32 %v53, %v99
  %v134 = vmax.f32 %v54, %v101
  %v135 = vmax.f32 %v55, %v103
  %vm136 = vcmask 31744
  %137 = vst.msk [vmem:[%s1] sm:$0xff] %vm136, %v120
  %138 = vst.msk [vmem:[%s1 + $0x8] sm:$0xff] %vm136, %v121
  %139 = vst.msk [vmem:[%s1 + $0x10] sm:$0xff] %vm136, %v122
  %140 = vst.msk [vmem:[%s1 + $0x18] sm:$0xff] %vm136, %v123
  %141 = vst.msk [vmem:[%s1 + $0x20] sm:$0xff] %vm136, %v124
  %142 = vst.msk [vmem:[%s1 + $0x28] sm:$0xff] %vm136, %v125
  %143 = vst.msk [vmem:[%s1 + $0x30] sm:$0xff] %vm136, %v126
  %144 = vst.msk [vmem:[%s1 + $0x38] sm:$0xff] %vm136, %v127
  %145 = vst.msk [vmem:[%s1 + $0x40] sm:$0xff] %vm136, %v128
  %146 = vst.msk [vmem:[%s1 + $0x48] sm:$0xff] %vm136, %v129
  %147 = vst.msk [vmem:[%s1 + $0x50] sm:$0xff] %vm136, %v130
  %148 = vst.msk [vmem:[%s1 + $0x58] sm:$0xff] %vm136, %v131
  %149 = vst.msk [vmem:[%s1 + $0x60] sm:$0xff] %vm136, %v132
  %150 = vst.msk [vmem:[%s1 + $0x68] sm:$0xff] %vm136, %v133
  %151 = vst.msk [vmem:[%s1 + $0x70] sm:$0xff] %vm136, %v134
  %152 = vst.msk [vmem:[%s1 + $0x78] sm:$0xff] %vm136, %v135
  // Predicated region
  $region6: #{down_block_forward.5} parent=0 // pred_check
    _
  $region7: #{down_block_forward.5} parent=0 // pred_check_branch
    %154 = sbr.rel (0) target = $region9
  $region8: #{down_block_forward.5} parent=0 // pred_region
    _
  $region9: #{down_block_forward.5} parent=0 // pred_fallthru
    _
  // Predicated region
  $region10: #{down_block_forward.5} parent=0 // pred_check
    _
  $region11: #{down_block_forward.5} parent=0 // pred_check_branch
    %156 = sbr.rel (0) target = $region13
  $region12: #{down_block_forward.5} parent=0 // pred_region
    _
  $region13: #{down_block_forward.5} parent=0 // pred_fallthru
    _

// kernel: down_block_forward.7
$region0: #{down_block_forward.7}
  #allocation0 [shape = 'u32[]', space=smem, size = 0x4, offset = 0x4, fixed_abs, tag = 'smem constant byte address 0x4 - core index']
  #allocation1 [shape = 'u32[144,128]{1,0:T(1,128)}', space=vmem, size = 0x12000, scoped, tag = 'internal scratch']
  %s0 = inlined_call_operand.vmem [shape: f32[128,128], index: 0, kind: input, shape index: {}]
  %s1 = inlined_call_operand.vmem [shape: f32[1,128], index: 1, kind: input, shape index: {}]
  %s2 = inlined_call_operand.vmem [shape: f32[1,128], index: 2, kind: input, shape index: {}]
  %s3 = inlined_call_operand.vmem [shape: f32[128,128], index: 3, kind: output, shape index: {}]
  %s4 = sld [smem:[#allocation0]]
  $region22: #{down_block_forward.7} parent=0
    _
  %s6 = ssub.s32 1, %s4
  %s7 = scalar_select 0, %s6, %s4
  // Predicated region
  $region2: #{down_block_forward.7} parent=0 // pred_check
    _
  $region3: #{down_block_forward.7} parent=0 // pred_check_branch
    %9 = sbr.rel (0) target = $region5
  $region4: #{down_block_forward.7} parent=0 // pred_region
    _
  $region5: #{down_block_forward.7} parent=0 // pred_fallthru
    _
  // Predicated region
  $region6: #{down_block_forward.7} parent=0 // pred_check
    _
  $region7: #{down_block_forward.7} parent=0 // pred_check_branch
    %11 = sbr.rel (0) target = $region9
  $region8: #{down_block_forward.7} parent=0 // pred_region
    _
  $region9: #{down_block_forward.7} parent=0 // pred_fallthru
    _
  // Predicated region
  $region10: #{down_block_forward.7} parent=0 // pred_check
    _
  $region11: #{down_block_forward.7} parent=0 // pred_check_branch
    %13 = sbr.rel (0) target = $region13
  $region12: #{down_block_forward.7} parent=0 // pred_region
    _
  $region13: #{down_block_forward.7} parent=0 // pred_fallthru
    _
  %v14 = vld [vmem:[%s0] sm:$0xff]
  %v15 = vld [vmem:[%s0 + $0x8] sm:$0xff]
  %v16 = vld [vmem:[%s0 + $0x10] sm:$0xff]
  %v17 = vld [vmem:[%s0 + $0x18] sm:$0xff]
  %v18 = vld [vmem:[%s0 + $0x20] sm:$0xff]
  %v19 = vld [vmem:[%s0 + $0x28] sm:$0xff]
  %v20 = vld [vmem:[%s0 + $0x30] sm:$0xff]
  %v21 = vld [vmem:[%s0 + $0x38] sm:$0xff]
  %v22 = vld [vmem:[%s0 + $0x40] sm:$0xff]
  %v23 = vld [vmem:[%s0 + $0x48] sm:$0xff]
  %v24 = vld [vmem:[%s0 + $0x50] sm:$0xff]
  %v25 = vld [vmem:[%s0 + $0x58] sm:$0xff]
  %v26 = vld [vmem:[%s0 + $0x60] sm:$0xff]
  %v27 = vld [vmem:[%s0 + $0x68] sm:$0xff]
  %v28 = vld [vmem:[%s0 + $0x70] sm:$0xff]
  %v29 = vld [vmem:[%s0 + $0x78] sm:$0xff]
  %v30 = vld [vmem:[%s1] sm:$0x1]
  %v32 = vlaneseq
  %v33 = vshrl.u32 %v32, 7
  %v34 = vsub.s32 0, %v33
  %v35 = vrot.slane %v30, %v34
  %v37 = vmul.f32 %v14, %v35
  %v38 = vmul.f32 %v15, %v35
  %v39 = vmul.f32 %v16, %v35
  %v40 = vmul.f32 %v17, %v35
  %v41 = vmul.f32 %v18, %v35
  %v42 = vmul.f32 %v19, %v35
  %v43 = vmul.f32 %v20, %v35
  %v44 = vmul.f32 %v21, %v35
  %v45 = vmul.f32 %v22, %v35
  %v46 = vmul.f32 %v23, %v35
  %v47 = vmul.f32 %v24, %v35
  %v48 = vmul.f32 %v25, %v35
  %v49 = vmul.f32 %v26, %v35
  %v50 = vmul.f32 %v27, %v35
  %v51 = vmul.f32 %v28, %v35
  %v52 = vmul.f32 %v29, %v35
  %v53 = vld [vmem:[%s2] sm:$0x1]
  %v55 = vlaneseq
  %v56 = vshrl.u32 %v55, 7
  %v57 = vsub.s32 0, %v56
  %v58 = vrot.slane %v53, %v57
  %v60 = vadd.f32 %v37, %v58
  %v61 = vadd.f32 %v38, %v58
  %v62 = vadd.f32 %v39, %v58
  %v63 = vadd.f32 %v40, %v58
  %v64 = vadd.f32 %v41, %v58
  %v65 = vadd.f32 %v42, %v58
  %v66 = vadd.f32 %v43, %v58
  %v67 = vadd.f32 %v44, %v58
  %v68 = vadd.f32 %v45, %v58
  %v69 = vadd.f32 %v46, %v58
  %v70 = vadd.f32 %v47, %v58
  %v71 = vadd.f32 %v48, %v58
  %v72 = vadd.f32 %v49, %v58
  %v73 = vadd.f32 %v50, %v58
  %v74 = vadd.f32 %v51, %v58
  %v75 = vadd.f32 %v52, %v58
  %vm76 = vcmp.ge.f32.partialorder %v60, 0.0
  %vm77 = vcmp.ge.f32.partialorder %v61, 0.0
  %vm78 = vcmp.ge.f32.partialorder %v62, 0.0
  %vm79 = vcmp.ge.f32.partialorder %v63, 0.0
  %vm80 = vcmp.ge.f32.partialorder %v64, 0.0
  %vm81 = vcmp.ge.f32.partialorder %v65, 0.0
  %vm82 = vcmp.ge.f32.partialorder %v66, 0.0
  %vm83 = vcmp.ge.f32.partialorder %v67, 0.0
  %vm84 = vcmp.ge.f32.partialorder %v68, 0.0
  %vm85 = vcmp.ge.f32.partialorder %v69, 0.0
  %vm86 = vcmp.ge.f32.partialorder %v70, 0.0
  %vm87 = vcmp.ge.f32.partialorder %v71, 0.0
  %vm88 = vcmp.ge.f32.partialorder %v72, 0.0
  %vm89 = vcmp.ge.f32.partialorder %v73, 0.0
  %vm90 = vcmp.ge.f32.partialorder %v74, 0.0
  %vm91 = vcmp.ge.f32.partialorder %v75, 0.0
  %v92 = vmul.f32 %v60, 0.01
  %v93 = vmul.f32 %v61, 0.01
  %v94 = vmul.f32 %v62, 0.01
  %v95 = vmul.f32 %v63, 0.01
  %v96 = vmul.f32 %v64, 0.01
  %v97 = vmul.f32 %v65, 0.01
  %v98 = vmul.f32 %v66, 0.01
  %v99 = vmul.f32 %v67, 0.01
  %v100 = vmul.f32 %v68, 0.01
  %v101 = vmul.f32 %v69, 0.01
  %v102 = vmul.f32 %v70, 0.01
  %v103 = vmul.f32 %v71, 0.01
  %v104 = vmul.f32 %v72, 0.01
  %v105 = vmul.f32 %v73, 0.01
  %v106 = vmul.f32 %v74, 0.01
  %v107 = vmul.f32 %v75, 0.01
  %v108 = vsel %vm76, %v60, %v92
  %v109 = vsel %vm77, %v61, %v93
  %v110 = vsel %vm78, %v62, %v94
  %v111 = vsel %vm79, %v63, %v95
  %v112 = vsel %vm80, %v64, %v96
  %v113 = vsel %vm81, %v65, %v97
  %v114 = vsel %vm82, %v66, %v98
  %v115 = vsel %vm83, %v67, %v99
  %v116 = vsel %vm84, %v68, %v100
  %v117 = vsel %vm85, %v69, %v101
  %v118 = vsel %vm86, %v70, %v102
  %v119 = vsel %vm87, %v71, %v103
  %v120 = vsel %vm88, %v72, %v104
  %v121 = vsel %vm89, %v73, %v105
  %v122 = vsel %vm90, %v74, %v106
  %v123 = vsel %vm91, %v75, %v107
  %124 = vst [vmem:[%s3] sm:$0xff] %v108
  %125 = vst [vmem:[%s3 + $0x8] sm:$0xff] %v109
  %126 = vst [vmem:[%s3 + $0x10] sm:$0xff] %v110
  %127 = vst [vmem:[%s3 + $0x18] sm:$0xff] %v111
  %128 = vst [vmem:[%s3 + $0x20] sm:$0xff] %v112
  %129 = vst [vmem:[%s3 + $0x28] sm:$0xff] %v113
  %130 = vst [vmem:[%s3 + $0x30] sm:$0xff] %v114
  %131 = vst [vmem:[%s3 + $0x38] sm:$0xff] %v115
  %132 = vst [vmem:[%s3 + $0x40] sm:$0xff] %v116
  %133 = vst [vmem:[%s3 + $0x48] sm:$0xff] %v117
  %134 = vst [vmem:[%s3 + $0x50] sm:$0xff] %v118
  %135 = vst [vmem:[%s3 + $0x58] sm:$0xff] %v119
  %136 = vst [vmem:[%s3 + $0x60] sm:$0xff] %v120
  %137 = vst [vmem:[%s3 + $0x68] sm:$0xff] %v121
  %138 = vst [vmem:[%s3 + $0x70] sm:$0xff] %v122
  %139 = vst [vmem:[%s3 + $0x78] sm:$0xff] %v123
  // Predicated region
  $region14: #{down_block_forward.7} parent=0 // pred_check
    _
  $region15: #{down_block_forward.7} parent=0 // pred_check_branch
    %141 = sbr.rel (0) target = $region17
  $region16: #{down_block_forward.7} parent=0 // pred_region
    _
  $region17: #{down_block_forward.7} parent=0 // pred_fallthru
    _
  // Predicated region
  $region18: #{down_block_forward.7} parent=0 // pred_check
    _
  $region19: #{down_block_forward.7} parent=0 // pred_check_branch
    %143 = sbr.rel (0) target = $region21
  $region20: #{down_block_forward.7} parent=0 // pred_region
    _
  $region21: #{down_block_forward.7} parent=0 // pred_fallthru
    _

// kernel: down_block_forward.6
$region0: #{down_block_forward.6}
  #allocation0 [shape = 'u32[]', space=smem, size = 0x4, offset = 0x4, fixed_abs, tag = 'smem constant byte address 0x4 - core index']
  #allocation1 [shape = 'u32[144,128]{1,0:T(1,128)}', space=vmem, size = 0x12000, scoped, tag = 'internal scratch']
  %s0 = inlined_call_operand.vmem [shape: f32[2,10,10,128], index: 0, kind: input, shape index: {}, may-alias: {0,1,2}]
  %s1 = inlined_call_operand.vmem [shape: f32[2,10,10,128], index: 1, kind: input, shape index: {}, may-alias: {0,1,2}]
  %s2 = inlined_call_operand.vmem [shape: f32[2,10,10,128], index: 2, kind: input, shape index: {}, may-alias: {0,1,2}]
  %s3 = inlined_call_operand.vmem [shape: f32[9,128,128], index: 3, kind: input, shape index: {}]
  %s4 = inlined_call_operand.vmem [shape: f32[128,128], index: 4, kind: output, shape index: {0}]
  %s5 = inlined_call_operand.vmem [shape: f32[2,2,128], index: 5, kind: output, shape index: {1}]
  %6 = xla_tuple %s4, %s5
  %s7 = sld [smem:[#allocation0]]
  $region57: #{down_block_forward.6} parent=0
    _
  %s9 = ssub.s32 1, %s7
  %s10 = scalar_select 0, %s9, %s7
  loop: start=0, step=1, limit=4
  $region2: #{down_block_forward.6} parent=0 // loop_pre_header
    _
  $region3: #{down_block_forward.6} parent=0 // loop_header
    %s12 = sphi 0, %s16
    %p13 = scmp.ge.s32.totalorder %s12, 4
    %s19 = sphi 0, %s31
    %s20 = sphi 0, %s27
    %s21 = sphi 0, %s19
    %s22 = sphi 0, %s20
    %s23 = sphi 0, %s21
    %s24 = sphi 0, %s22
    %s36 = sphi 0, %s38
    %s39 = sphi 0, %s36
    %s40 = sphi 0, %s39
    %s56 = sphi 0, %s40
    %s68 = sphi 0, %s70
    %s71 = sphi 0, %s68
    %s72 = sphi 0, %s71
    %s88 = sphi 0, %s72
    %s100 = sphi 0, %s102
    %s103 = sphi 0, %s100
    %s104 = sphi 0, %s103
    %s120 = sphi 0, %s104
    %s124 = sphi 0, %s124
    %s126 = sphi 0, %s124
    %s127 = sphi 0, %s126
    %s141 = sphi 0, %s127
    %s149 = sphi 0, %s151
    %s152 = sphi 0, %s149
    %s153 = sphi 0, %s152
    %s169 = sphi 0, %s153
    %s177 = sphi 0, %s179
    %s180 = sphi 0, %s177
    %s181 = sphi 0, %s180
    %s197 = sphi 0, %s181
  $region4: #{down_block_forward.6} parent=0 // loop_header_branch
    %15 = sbr.rel (%p13) target = $region8
  $region5: #{down_block_forward.6} parent=0 // loop_body
    %s17 = ssub.s32 %s12, 1
    %s18 = ssub.s32 %s12, 2
    %s25 = sadd.s32 1, %s20
    %p26 = scmp.ge.s32.totalorder %s25, 1
    %s27 = scalar_select %p26, 0, %s25
    %s28 = sadd.s32 1, %s19
    %s29 = scalar_select %p26, %s28, %s19
    %p30 = scmp.ge.s32.totalorder %s29, 2
    %s31 = scalar_select %p30, 0, %s29
    %s32 = ssub.s32 %s19, %s31
    %s33 = ssub.s32 %s20, %s27
    %s34 = sor.u32 %s32, %s33
    %p35 = scmp.eq.s32.totalorder %s34, 0
    %s37 = sadd.s32 %s36, 1
    %s38 = scalar_select %p35, %s36, %s37
    %p41 = pneg %p35
    %p42 = scmp.eq.s32.totalorder %s12, 1
    %p43 = por %p41, %p42
    %p44 = scmp.ne.s32.totalorder %s36, %s39
    %p45 = scmp.eq.s32.totalorder %s12, 0
    %p46 = por %p44, %p45
    %p47 = scmp.ne.s32.totalorder %s36, %s39
    %p48 = scmp.eq.s32.totalorder %s17, 1
    %p49 = por %p47, %p48
    %p50 = scmp.ne.s32.totalorder %s39, %s40
    %p51 = scmp.eq.s32.totalorder %s17, 0
    %p52 = por %p50, %p51
    %p53 = scmp.ne.s32.totalorder %s39, %s40
    %p54 = scmp.eq.s32.totalorder %s18, 1
    %p55 = por %p53, %p54
    %p57 = scmp.ne.s32.totalorder %s40, %s56
    %p58 = scmp.eq.s32.totalorder %s18, 0
    %p59 = por %p57, %p58
    %s60 = smul.u32 %s20, 8
    %s61 = sadd.s32 %s60, 8
    %s62 = smul.u32 %s27, 8
    %s63 = sadd.s32 %s62, 8
    %s64 = ssub.s32 %s19, %s31
    %s65 = ssub.s32 %s61, %s63
    %s66 = sor.u32 %s64, %s65
    %p67 = scmp.eq.s32.totalorder %s66, 0
    %s69 = sadd.s32 %s68, 1
    %s70 = scalar_select %p67, %s68, %s69
    %p73 = pneg %p67
    %p74 = scmp.eq.s32.totalorder %s12, 1
    %p75 = por %p73, %p74
    %p76 = scmp.ne.s32.totalorder %s68, %s71
    %p77 = scmp.eq.s32.totalorder %s12, 0
    %p78 = por %p76, %p77
    %p79 = scmp.ne.s32.totalorder %s68, %s71
    %p80 = scmp.eq.s32.totalorder %s17, 1
    %p81 = por %p79, %p80
    %p82 = scmp.ne.s32.totalorder %s71, %s72
    %p83 = scmp.eq.s32.totalorder %s17, 0
    %p84 = por %p82, %p83
    %p85 = scmp.ne.s32.totalorder %s71, %s72
    %p86 = scmp.eq.s32.totalorder %s18, 1
    %p87 = por %p85, %p86
    %p89 = scmp.ne.s32.totalorder %s72, %s88
    %p90 = scmp.eq.s32.totalorder %s18, 0
    %p91 = por %p89, %p90
    %s92 = smul.u32 %s20, 8
    %s93 = sadd.s32 %s92, 9
    %s94 = smul.u32 %s27, 8
    %s95 = sadd.s32 %s94, 9
    %s96 = ssub.s32 %s19, %s31
    %s97 = ssub.s32 %s93, %s95
    %s98 = sor.u32 %s96, %s97
    %p99 = scmp.eq.s32.totalorder %s98, 0
    %s101 = sadd.s32 %s100, 1
    %s102 = scalar_select %p99, %s100, %s101
    %p105 = pneg %p99
    %p106 = scmp.eq.s32.totalorder %s12, 1
    %p107 = por %p105, %p106
    %p108 = scmp.ne.s32.totalorder %s100, %s103
    %p109 = scmp.eq.s32.totalorder %s12, 0
    %p110 = por %p108, %p109
    %p111 = scmp.ne.s32.totalorder %s100, %s103
    %p112 = scmp.eq.s32.totalorder %s17, 1
    %p113 = por %p111, %p112
    %p114 = scmp.ne.s32.totalorder %s103, %s104
    %p115 = scmp.eq.s32.totalorder %s17, 0
    %p116 = por %p114, %p115
    %p117 = scmp.ne.s32.totalorder %s103, %s104
    %p118 = scmp.eq.s32.totalorder %s18, 1
    %p119 = por %p117, %p118
    %p121 = scmp.ne.s32.totalorder %s104, %s120
    %p122 = scmp.eq.s32.totalorder %s18, 0
    %p123 = por %p121, %p122
    %s125 = sadd.s32 %s124, 1
    %p128 = scmp.eq.s32.totalorder %s12, 1
    %p129 = scmp.ne.s32.totalorder %s124, %s126
    %p130 = scmp.eq.s32.totalorder %s12, 0
    %p131 = por %p129, %p130
    %p132 = scmp.ne.s32.totalorder %s124, %s126
    %p133 = scmp.eq.s32.totalorder %s17, 1
    %p134 = por %p132, %p133
    %p135 = scmp.ne.s32.totalorder %s126, %s127
    %p136 = scmp.eq.s32.totalorder %s17, 0
    %p137 = por %p135, %p136
    %p138 = scmp.ne.s32.totalorder %s126, %s127
    %p139 = scmp.eq.s32.totalorder %s18, 1
    %p140 = por %p138, %p139
    %p142 = scmp.ne.s32.totalorder %s127, %s141
    %p143 = scmp.eq.s32.totalorder %s18, 0
    %p144 = por %p142, %p143
    %s145 = sadd.s32 %s19, %s20
    %s146 = sadd.s32 %s31, %s27
    %s147 = ssub.s32 %s145, %s146
    %p148 = scmp.eq.s32.totalorder %s147, 0
    %s150 = sadd.s32 %s149, 1
    %s151 = scalar_select %p148, %s149, %s150
    %p154 = pneg %p148
    %p155 = scmp.eq.s32.totalorder %s12, 1
    %p156 = por %p154, %p155
    %p157 = scmp.ne.s32.totalorder %s149, %s152
    %p158 = scmp.eq.s32.totalorder %s12, 0
    %p159 = por %p157, %p158
    %p160 = scmp.ne.s32.totalorder %s149, %s152
    %p161 = scmp.eq.s32.totalorder %s17, 1
    %p162 = por %p160, %p161
    %p163 = scmp.ne.s32.totalorder %s152, %s153
    %p164 = scmp.eq.s32.totalorder %s17, 0
    %p165 = por %p163, %p164
    %p166 = scmp.ne.s32.totalorder %s152, %s153
    %p167 = scmp.eq.s32.totalorder %s18, 1
    %p168 = por %p166, %p167
    %p170 = scmp.ne.s32.totalorder %s153, %s169
    %p171 = scmp.eq.s32.totalorder %s18, 0
    %p172 = por %p170, %p171
    %s173 = sadd.s32 %s19, %s20
    %s174 = sadd.s32 %s31, %s27
    %s175 = ssub.s32 %s173, %s174
    %p176 = scmp.eq.s32.totalorder %s175, 0
    %s178 = sadd.s32 %s177, 1
    %s179 = scalar_select %p176, %s177, %s178
    %p182 = pneg %p176
    %p183 = scmp.eq.s32.totalorder %s12, 1
    %p184 = por %p182, %p183
    %p185 = scmp.ne.s32.totalorder %s177, %s180
    %p186 = scmp.eq.s32.totalorder %s12, 0
    %p187 = por %p185, %p186
    %p188 = scmp.ne.s32.totalorder %s177, %s180
    %p189 = scmp.eq.s32.totalorder %s17, 1
    %p190 = por %p188, %p189
    %p191 = scmp.ne.s32.totalorder %s180, %s181
    %p192 = scmp.eq.s32.totalorder %s17, 0
    %p193 = por %p191, %p192
    %p194 = scmp.ne.s32.totalorder %s180, %s181
    %p195 = scmp.eq.s32.totalorder %s18, 1
    %p196 = por %p194, %p195
    %p198 = scmp.ne.s32.totalorder %s181, %s197
    %p199 = scmp.eq.s32.totalorder %s18, 0
    %p200 = por %p198, %p199
    %p201 = scmp.le.s32.totalorder 1, %s12
    %p202 = scmp.lt.s32.totalorder %s12, 3
    %p203 = pnand %p201, %p202
    %p204 = pneg %p203
    // Predicated region
    $region9: #{down_block_forward.6} parent=5 // pred_check
      _
    $region10: #{down_block_forward.6} parent=5 // pred_check_branch
      %206 = sbr.rel (%p203) target = $region12
    $region11: #{down_block_forward.6} parent=5 // pred_region
      %s207 = ssub.s32 %s12, 1
      // Predicated region
      $region13: #{down_block_forward.6} parent=11 // pred_check
        %p208 = pneg %p137
      $region14: #{down_block_forward.6} parent=11 // pred_check_branch
        %210 = sbr.rel (%p208) target = $region16
      $region15: #{down_block_forward.6} parent=11 // pred_region
        _
      $region16: #{down_block_forward.6} parent=11 // pred_fallthru
        _
    $region12: #{down_block_forward.6} parent=5 // pred_fallthru
      _
    %p211 = scmp.lt.s32.totalorder %s12, 2
    // Predicated region
    $region17: #{down_block_forward.6} parent=5 // pred_check
      %p212 = pneg %p211
    $region18: #{down_block_forward.6} parent=5 // pred_check_branch
      %214 = sbr.rel (%p212) target = $region20
    $region19: #{down_block_forward.6} parent=5 // pred_region
      // Predicated region
      $region21: #{down_block_forward.6} parent=19 // pred_check
        %p215 = pneg %p46
      $region22: #{down_block_forward.6} parent=19 // pred_check_branch
        %217 = sbr.rel (%p215) target = $region24
      $region23: #{down_block_forward.6} parent=19 // pred_region
        %s218 = smul.u32 8, %s20
        %s219 = ssub.s32 10, %s218
        %p220 = scmp.lt.s32.totalorder %s219, 8
        %s221 = scalar_select %p220, %s219, 8
        %s222 = smul.u32 128, %s221
        %s223 = smul.u32 %s222, 2
        %p224 = scmp.lt.s32.totalorder %s19, 1
        %s225 = scalar_select %p224, %s19, 1
        %p226 = scmp.lt.s32.totalorder %s218, 9
        %s227 = scalar_select %p226, %s218, 9
        %s228 = smul.addr %s227, 2
        %s229 = smul.addr %s225, 20
        %s230 = sadd.s32 %s228, %s229
        %s231 = smul.addr %s230, 8
        %s232 = scalar_lea.vmem %s0, %s231
        %s233 = smul.u32 8, %s20
        %s234 = ssub.s32 10, %s233
        %p235 = scmp.lt.s32.totalorder %s234, 8
        %s236 = scalar_select %p235, %s234, 8
        %s237 = smul.u32 128, %s236
        %s238 = smul.u32 %s237, 2
      $region24: #{down_block_forward.6} parent=19 // pred_fallthru
        _
      // Predicated region
      $region25: #{down_block_forward.6} parent=19 // pred_check
        %p239 = pneg %p78
      $region26: #{down_block_forward.6} parent=19 // pred_check_branch
        %241 = sbr.rel (%p239) target = $region28
      $region27: #{down_block_forward.6} parent=19 // pred_region
        %s242 = smul.u32 %s20, 8
        %s243 = sadd.s32 %s242, 8
        %p244 = scmp.lt.s32.totalorder %s19, 1
        %s245 = scalar_select %p244, %s19, 1
        %p246 = scmp.lt.s32.totalorder %s243, 9
        %s247 = scalar_select %p246, %s243, 9
        %s248 = smul.addr %s247, 2
        %s249 = smul.addr %s245, 20
        %s250 = sadd.s32 %s248, %s249
        %s251 = smul.addr %s250, 8
        %s252 = scalar_lea.vmem %s1, %s251
        %s253 = smul.u32 %s20, 8
        %s254 = sadd.s32 %s253, 8
      $region28: #{down_block_forward.6} parent=19 // pred_fallthru
        _
      // Predicated region
      $region29: #{down_block_forward.6} parent=19 // pred_check
        %p255 = pneg %p110
      $region30: #{down_block_forward.6} parent=19 // pred_check_branch
        %257 = sbr.rel (%p255) target = $region32
      $region31: #{down_block_forward.6} parent=19 // pred_region
        %s258 = smul.u32 %s20, 8
        %s259 = sadd.s32 %s258, 9
        %p260 = scmp.lt.s32.totalorder %s19, 1
        %s261 = scalar_select %p260, %s19, 1
        %p262 = scmp.lt.s32.totalorder %s259, 9
        %s263 = scalar_select %p262, %s259, 9
        %s264 = smul.addr %s263, 2
        %s265 = smul.addr %s261, 20
        %s266 = sadd.s32 %s264, %s265
        %s267 = smul.addr %s266, 8
        %s268 = scalar_lea.vmem %s2, %s267
        %s269 = smul.u32 %s20, 8
        %s270 = sadd.s32 %s269, 9
      $region32: #{down_block_forward.6} parent=19 // pred_fallthru
        _
    $region20: #{down_block_forward.6} parent=5 // pred_fallthru
      _
    %p271 = scmp.le.s32.totalorder 1, %s12
    %p272 = scmp.lt.s32.totalorder %s12, 3
    %p273 = pnand %p271, %p272
    %p274 = pneg %p273
    // Predicated region
    $region33: #{down_block_forward.6} parent=5 // pred_check
      _
    $region34: #{down_block_forward.6} parent=5 // pred_check_branch
      %276 = sbr.rel (%p273) target = $region36
    $region35: #{down_block_forward.6} parent=5 // pred_region
      %s277 = ssub.s32 %s12, 1
      %s278 = smul.u32 8, %s22
      %s279 = ssub.s32 10, %s278
      %p280 = scmp.lt.s32.totalorder %s279, 8
      %s281 = scalar_select %p280, %s279, 8
      %s282 = smul.u32 128, %s281
      %s283 = smul.u32 %s282, 2
      %p284 = scmp.lt.s32.totalorder %s21, 1
      %s285 = scalar_select %p284, %s21, 1
      %p286 = scmp.lt.s32.totalorder %s278, 9
      %s287 = scalar_select %p286, %s278, 9
      %s288 = smul.addr %s287, 2
      %s289 = smul.addr %s285, 20
      %s290 = sadd.s32 %s288, %s289
      %s291 = smul.addr %s290, 8
      %s292 = scalar_lea.vmem %s0, %s291
      %p293 = pneg %p52
      %p294 = pneg %p49
      %s295 = smul.u32 %s22, 8
      %s296 = sadd.s32 %s295, 8
      %p297 = scmp.lt.s32.totalorder %s21, 1
      %s298 = scalar_select %p297, %s21, 1
      %p299 = scmp.lt.s32.totalorder %s296, 9
      %s300 = scalar_select %p299, %s296, 9
      %s301 = smul.addr %s300, 2
      %s302 = smul.addr %s298, 20
      %s303 = sadd.s32 %s301, %s302
      %s304 = smul.addr %s303, 8
      %s305 = scalar_lea.vmem %s1, %s304
      %p306 = pneg %p84
      %p307 = pneg %p81
      %s308 = smul.u32 %s22, 8
      %s309 = sadd.s32 %s308, 9
      %p310 = scmp.lt.s32.totalorder %s21, 1
      %s311 = scalar_select %p310, %s21, 1
      %p312 = scmp.lt.s32.totalorder %s309, 9
      %s313 = scalar_select %p312, %s309, 9
      %s314 = smul.addr %s313, 2
      %s315 = smul.addr %s311, 20
      %s316 = sadd.s32 %s314, %s315
      %s317 = smul.addr %s316, 8
      %s318 = scalar_lea.vmem %s2, %s317
      %p319 = pneg %p116
      %p320 = pneg %p113
      %p321 = pneg %p137
      %p322 = pneg %p134
      %p323 = pneg %p165
      %p324 = pneg %p162
      %s325 = sadd.s32 %s21, %s22
      %s326 = smul.u32 8, %s325
      %p327 = scmp.lt.s32.totalorder %s326, 15
      %s328 = scalar_select %p327, %s326, 15
      %s329 = smul.addr %s328, 8
      %s330 = scalar_lea.vmem %s4, %s329
      %p331 = pneg %p193
      %p332 = pneg %p190
      %s333 = sadd.s32 %s21, %s22
      %p334 = scmp.lt.s32.totalorder %s333, 1
      %s335 = scalar_select %p334, %s333, 1
      %s336 = smul.addr %s335, 2
      %s337 = scalar_lea.vmem %s5, %s336
      %s338 = smul.u32 8, %s22
      %s339 = ssub.s32 10, %s338
      %p340 = scmp.lt.s32.totalorder %s339, 8
      %s341 = scalar_select %p340, %s339, 8
      %s342 = smul.u32 128, %s341
      %s343 = smul.u32 %s342, 2
      %p344 = scmp.lt.s32.totalorder %s21, 1
      %s345 = scalar_select %p344, %s21, 1
      %p346 = scmp.lt.s32.totalorder %s338, 9
      %s347 = scalar_select %p346, %s338, 9
      %s348 = smul.addr %s347, 2
      %s349 = smul.addr %s345, 20
      %s350 = sadd.s32 %s348, %s349
      %s351 = smul.addr %s350, 8
      %s352 = scalar_lea.vmem %s0, %s351
      %s353 = smul.u32 8, %s22
      %s354 = ssub.s32 10, %s353
      %p355 = scmp.lt.s32.totalorder %s354, 8
      %s356 = scalar_select %p355, %s354, 8
      %s357 = smul.u32 128, %s356
      %s358 = smul.u32 %s357, 2
      %s359 = smul.u32 %s22, 8
      %s360 = sadd.s32 %s359, 8
      %p361 = scmp.lt.s32.totalorder %s21, 1
      %s362 = scalar_select %p361, %s21, 1
      %p363 = scmp.lt.s32.totalorder %s360, 9
      %s364 = scalar_select %p363, %s360, 9
      %s365 = smul.addr %s364, 2
      %s366 = smul.addr %s362, 20
      %s367 = sadd.s32 %s365, %s366
      %s368 = smul.addr %s367, 8
      %s369 = scalar_lea.vmem %s1, %s368
      %s370 = smul.u32 %s22, 8
      %s371 = sadd.s32 %s370, 8
      %s372 = smul.u32 %s22, 8
      %s373 = sadd.s32 %s372, 9
      %p374 = scmp.lt.s32.totalorder %s21, 1
      %s375 = scalar_select %p374, %s21, 1
      %p376 = scmp.lt.s32.totalorder %s373, 9
      %s377 = scalar_select %p376, %s373, 9
      %s378 = smul.addr %s377, 2
      %s379 = smul.addr %s375, 20
      %s380 = sadd.s32 %s378, %s379
      %s381 = smul.addr %s380, 8
      %s382 = scalar_lea.vmem %s2, %s381
      %s383 = smul.u32 %s22, 8
      %s384 = sadd.s32 %s383, 9
      %s385 = sadd.s32 %s21, %s22
      %s386 = smul.u32 8, %s385
      %p387 = scmp.lt.s32.totalorder %s386, 15
      %s388 = scalar_select %p387, %s386, 15
      %s389 = smul.addr %s388, 8
      %s390 = scalar_lea.vmem %s4, %s389
      %s391 = sadd.s32 %s21, %s22
      %s392 = smul.u32 8, %s391
      %s393 = sadd.s32 %s21, %s22
      %p394 = scmp.lt.s32.totalorder %s393, 1
      %s395 = scalar_select %p394, %s393, 1
      %s396 = smul.addr %s395, 2
      %s397 = scalar_lea.vmem %s5, %s396
      %s398 = sadd.s32 %s21, %s22
      %v399 = vld [vmem:[%s352] sm:$0xff]
      %v400 = vld [vmem:[%s352 + $0x8] sm:$0x3]
      %v401 = vld [vmem:[%s352 + $0x10] sm:$0xff]
      %v402 = vld [vmem:[%s352 + $0x18] sm:$0x3]
      %v403 = vld [vmem:[%s352 + $0x20] sm:$0xff]
      %v404 = vld [vmem:[%s352 + $0x28] sm:$0x3]
      %v405 = vld [vmem:[%s352 + $0x30] sm:$0xff]
      %v406 = vld [vmem:[%s352 + $0x38] sm:$0x3]
      %v407 = vld [vmem:[%s352 + $0x40] sm:$0xff]
      %v408 = vld [vmem:[%s352 + $0x48] sm:$0x3]
      %v409 = vld [vmem:[%s352 + $0x50] sm:$0xff]
      %v410 = vld [vmem:[%s352 + $0x58] sm:$0x3]
      %v411 = vld [vmem:[%s352 + $0x60] sm:$0xff]
      %v412 = vld [vmem:[%s352 + $0x68] sm:$0x3]
      %v413 = vld [vmem:[%s352 + $0x70] sm:$0xff]
      %v414 = vld [vmem:[%s352 + $0x78] sm:$0x3]
      %v415 = vld [vmem:[%s369] sm:$0xff]
      %v416 = vld [vmem:[%s369 + $0x8] sm:$0x3]
      %v417 = vld [vmem:[%s382] sm:$0xff]
      %v418 = vld [vmem:[%s382 + $0x8] sm:$0x3]
      %v419 = vld [vmem:[%s3] sm:$0xff]
      %v420 = vld [vmem:[%s3 + $0x8] sm:$0xff]
      %v421 = vld [vmem:[%s3 + $0x10] sm:$0xff]
      %v422 = vld [vmem:[%s3 + $0x18] sm:$0xff]
      %v423 = vld [vmem:[%s3 + $0x20] sm:$0xff]
      %v424 = vld [vmem:[%s3 + $0x28] sm:$0xff]
      %v425 = vld [vmem:[%s3 + $0x30] sm:$0xff]
      %v426 = vld [vmem:[%s3 + $0x38] sm:$0xff]
      %v427 = vld [vmem:[%s3 + $0x40] sm:$0xff]
      %v428 = vld [vmem:[%s3 + $0x48] sm:$0xff]
      %v429 = vld [vmem:[%s3 + $0x50] sm:$0xff]
      %v430 = vld [vmem:[%s3 + $0x58] sm:$0xff]
      %v431 = vld [vmem:[%s3 + $0x60] sm:$0xff]
      %v432 = vld [vmem:[%s3 + $0x68] sm:$0xff]
      %v433 = vld [vmem:[%s3 + $0x70] sm:$0xff]
      %v434 = vld [vmem:[%s3 + $0x78] sm:$0xff]
      %vm451 = vcmask 1046528
      %v452 = vrot.slane %v399, 1
      %v453 = vrot.slane %v400, 1
      %v454 = vsel %vm451, %v452, %v453
      %v455 = vrot.slane %v401, 1
      %v456 = vrot.slane %v402, 1
      %v457 = vsel %vm451, %v455, %v456
      %v458 = vrot.slane %v403, 1
      %v459 = vrot.slane %v404, 1
      %v460 = vsel %vm451, %v458, %v459
      %v461 = vrot.slane %v405, 1
      %v462 = vrot.slane %v406, 1
      %v463 = vsel %vm451, %v461, %v462
      %v464 = vrot.slane %v407, 1
      %v465 = vrot.slane %v408, 1
      %v466 = vsel %vm451, %v464, %v465
      %v467 = vrot.slane %v409, 1
      %v468 = vrot.slane %v410, 1
      %v469 = vsel %vm451, %v467, %v468
      %v470 = vrot.slane %v411, 1
      %v471 = vrot.slane %v412, 1
      %v472 = vsel %vm451, %v470, %v471
      %v473 = vrot.slane %v413, 1
      %v474 = vrot.slane %v414, 1
      %v475 = vsel %vm451, %v473, %v474
      %s484 = scalar_lea.vmem %s3, 128
      %v485 = vld [vmem:[%s484] sm:$0xff]
      %v486 = vld [vmem:[%s484 + $0x8] sm:$0xff]
      %v487 = vld [vmem:[%s484 + $0x10] sm:$0xff]
      %v488 = vld [vmem:[%s484 + $0x18] sm:$0xff]
      %v489 = vld [vmem:[%s484 + $0x20] sm:$0xff]
      %v490 = vld [vmem:[%s484 + $0x28] sm:$0xff]
      %v491 = vld [vmem:[%s484 + $0x30] sm:$0xff]
      %v492 = vld [vmem:[%s484 + $0x38] sm:$0xff]
      %v493 = vld [vmem:[%s484 + $0x40] sm:$0xff]
      %v494 = vld [vmem:[%s484 + $0x48] sm:$0xff]
      %v495 = vld [vmem:[%s484 + $0x50] sm:$0xff]
      %v496 = vld [vmem:[%s484 + $0x58] sm:$0xff]
      %v497 = vld [vmem:[%s484 + $0x60] sm:$0xff]
      %v498 = vld [vmem:[%s484 + $0x68] sm:$0xff]
      %v499 = vld [vmem:[%s484 + $0x70] sm:$0xff]
      %v500 = vld [vmem:[%s484 + $0x78] sm:$0xff]
      %501 = vmatprep.subr.mxu0 0.0
      %502 = vmatpush1.msra.mxu0 %v485
      %503 = vmatprep.subr.mxu0 0.0
      %504 = vmatpush1.msra.mxu0 %v486
      %505 = vmatprep.subr.mxu0 0.0
      %506 = vmatpush1.msra.mxu0 %v487
      %507 = vmatprep.subr.mxu0 0.0
      %508 = vmatpush1.msra.mxu0 %v488
      %509 = vmatprep.subr.mxu0 0.0
      %510 = vmatpush1.msra.mxu0 %v489
      %511 = vmatprep.subr.mxu0 0.0
      %512 = vmatpush1.msra.mxu0 %v490
      %513 = vmatprep.subr.mxu0 0.0
      %514 = vmatpush1.msra.mxu0 %v491
      %515 = vmatprep.subr.mxu0 0.0
      %516 = vmatpush1.msra.mxu0 %v492
      %517 = vmatprep.subr.mxu0 0.0
      %518 = vmatpush1.msra.mxu0 %v493
      %519 = vmatprep.subr.mxu0 0.0
      %520 = vmatpush1.msra.mxu0 %v494
      %521 = vmatprep.subr.mxu0 0.0
      %522 = vmatpush1.msra.mxu0 %v495
      %523 = vmatprep.subr.mxu0 0.0
      %524 = vmatpush1.msra.mxu0 %v496
      %525 = vmatprep.subr.mxu0 0.0
      %526 = vmatpush1.msra.mxu0 %v497
      %527 = vmatprep.subr.mxu0 0.0
      %528 = vmatpush1.msra.mxu0 %v498
      %529 = vmatprep.subr.mxu0 0.0
      %530 = vmatpush1.msra.mxu0 %v499
      %531 = vmatprep.subr.mxu0 0.0
      %532 = vmatpush1.msra.mxu0 %v500
      %533 = vmatprep.subr.mxu0 0.0
      %534 = vmatpush1.msra.mxu0 0.0
      %535 = vmatprep.subr.mxu0 0.0
      %536 = vmatpush1.msra.mxu0 0.0
      %537 = vmatprep.subr.mxu0 0.0
      %538 = vmatpush1.msra.mxu0 0.0
      %539 = vmatprep.subr.mxu0 0.0
      %540 = vmatpush1.msra.mxu0 0.0
      %541 = vmatprep.subr.mxu0 0.0
      %542 = vmatpush1.msra.mxu0 0.0
      %543 = vmatprep.subr.mxu0 0.0
      %544 = vmatpush1.msra.mxu0 0.0
      %545 = vmatprep.subr.mxu0 0.0
      %546 = vmatpush1.msra.mxu0 0.0
      %547 = vmatprep.subr.mxu0 0.0
      %548 = vmatpush1.msra.mxu0 0.0
      %549 = vmatprep.subr.mxu0 0.0
      %550 = vmatpush1.msra.mxu0 0.0
      %551 = vmatprep.subr.mxu0 0.0
      %552 = vmatpush1.msra.mxu0 0.0
      %553 = vmatprep.subr.mxu0 0.0
      %554 = vmatpush1.msra.mxu0 0.0
      %555 = vmatprep.subr.mxu0 0.0
      %556 = vmatpush1.msra.mxu0 0.0
      %557 = vmatprep.subr.mxu0 0.0
      %558 = vmatpush1.msra.mxu0 0.0
      %559 = vmatprep.subr.mxu0 0.0
      %560 = vmatpush1.msra.mxu0 0.0
      %561 = vmatprep.subr.mxu0 0.0
      %562 = vmatpush1.msra.mxu0 0.0
      %563 = vmatprep.subr.mxu0 0.0
      %564 = vmatpush1.msra.mxu0 0.0
      %565 = vmatprep.mubr.f32.mxu0 0.0
      %566 = vmatmul.mubr.f32.gmra.mrb[0].mxu0 %v454
      %v567 = vpop.f32.mrb[0].mxu0
      %v568 = vadd.f32 0.0, %v567
      %v569 = vpop.f32.mrb[0].mxu0
      %570 = vmatprep.mubr.f32.mxu0 0.0
      %571 = vmatmul.mubr.f32.gmra.mrb[0].mxu0 %v457
      %v572 = vpop.f32.mrb[0].mxu0
      %v573 = vadd.f32 0.0, %v572
      %v574 = vpop.f32.mrb[0].mxu0
      %575 = vmatprep.mubr.f32.mxu0 0.0
      %576 = vmatmul.mubr.f32.gmra.mrb[0].mxu0 %v460
      %v577 = vpop.f32.mrb[0].mxu0
      %v578 = vadd.f32 0.0, %v577
      %v579 = vpop.f32.mrb[0].mxu0
      %580 = vmatprep.mubr.f32.mxu0 0.0
      %581 = vmatmul.mubr.f32.gmra.mrb[0].mxu0 %v463
      %v582 = vpop.f32.mrb[0].mxu0
      %v583 = vadd.f32 0.0, %v582
      %v584 = vpop.f32.mrb[0].mxu0
      %585 = vmatprep.mubr.f32.mxu0 0.0
      %586 = vmatmul.mubr.f32.gmra.mrb[0].mxu0 %v466
      %v587 = vpop.f32.mrb[0].mxu0
      %v588 = vadd.f32 0.0, %v587
      %v589 = vpop.f32.mrb[0].mxu0
      %590 = vmatprep.mubr.f32.mxu0 0.0
      %591 = vmatmul.mubr.f32.gmra.mrb[0].mxu0 %v469
      %v592 = vpop.f32.mrb[0].mxu0
      %v593 = vadd.f32 0.0, %v592
      %v594 = vpop.f32.mrb[0].mxu0
      %595 = vmatprep.mubr.f32.mxu0 0.0
      %596 = vmatmul.mubr.f32.gmra.mrb[0].mxu0 %v472
      %v597 = vpop.f32.mrb[0].mxu0
      %v598 = vadd.f32 0.0, %v597
      %v599 = vpop.f32.mrb[0].mxu0
      %600 = vmatprep.mubr.f32.mxu0 0.0
      %601 = vmatmul.mubr.f32.gmra.mrb[0].mxu0 %v475
      %v602 = vpop.f32.mrb[0].mxu0
      %v603 = vadd.f32 0.0, %v602
      %v604 = vpop.f32.mrb[0].mxu0
      %605 = vdwg.mxu0
      %606 = vmatprep.subr.mxu0 0.0
      %607 = vmatpush1.msra.mxu0 %v419
      %608 = vmatprep.subr.mxu0 0.0
      %609 = vmatpush1.msra.mxu0 %v420
      %610 = vmatprep.subr.mxu0 0.0
      %611 = vmatpush1.msra.mxu0 %v421
      %612 = vmatprep.subr.mxu0 0.0
      %613 = vmatpush1.msra.mxu0 %v422
      %614 = vmatprep.subr.mxu0 0.0
      %615 = vmatpush1.msra.mxu0 %v423
      %616 = vmatprep.subr.mxu0 0.0
      %617 = vmatpush1.msra.mxu0 %v424
      %618 = vmatprep.subr.mxu0 0.0
      %619 = vmatpush1.msra.mxu0 %v425
      %620 = vmatprep.subr.mxu0 0.0
      %621 = vmatpush1.msra.mxu0 %v426
      %622 = vmatprep.subr.mxu0 0.0
      %623 = vmatpush1.msra.mxu0 %v427
      %624 = vmatprep.subr.mxu0 0.0
      %625 = vmatpush1.msra.mxu0 %v428
      %626 = vmatprep.subr.mxu0 0.0
      %627 = vmatpush1.msra.mxu0 %v429
      %628 = vmatprep.subr.mxu0 0.0
      %629 = vmatpush1.msra.mxu0 %v430
      %630 = vmatprep.subr.mxu0 0.0
      %631 = vmatpush1.msra.mxu0 %v431
      %632 = vmatprep.subr.mxu0 0.0
      %633 = vmatpush1.msra.mxu0 %v432
      %634 = vmatprep.subr.mxu0 0.0
      %635 = vmatpush1.msra.mxu0 %v433
      %636 = vmatprep.subr.mxu0 0.0
      %637 = vmatpush1.msra.mxu0 %v434
      %638 = vmatprep.subr.mxu0 0.0
      %639 = vmatpush1.msra.mxu0 0.0
      %640 = vmatprep.subr.mxu0 0.0
      %641 = vmatpush1.msra.mxu0 0.0
      %642 = vmatprep.subr.mxu0 0.0
      %643 = vmatpush1.msra.mxu0 0.0
      %644 = vmatprep.subr.mxu0 0.0
      %645 = vmatpush1.msra.mxu0 0.0
      %646 = vmatprep.subr.mxu0 0.0
      %647 = vmatpush1.msra.mxu0 0.0
      %648 = vmatprep.subr.mxu0 0.0
      %649 = vmatpush1.msra.mxu0 0.0
      %650 = vmatprep.subr.mxu0 0.0
      %651 = vmatpush1.msra.mxu0 0.0
      %652 = vmatprep.subr.mxu0 0.0
      %653 = vmatpush1.msra.mxu0 0.0
      %654 = vmatprep.subr.mxu0 0.0
      %655 = vmatpush1.msra.mxu0 0.0
      %656 = vmatprep.subr.mxu0 0.0
      %657 = vmatpush1.msra.mxu0 0.0
      %658 = vmatprep.subr.mxu0 0.0
      %659 = vmatpush1.msra.mxu0 0.0
      %660 = vmatprep.subr.mxu0 0.0
      %661 = vmatpush1.msra.mxu0 0.0
      %662 = vmatprep.subr.mxu0 0.0
      %663 = vmatpush1.msra.mxu0 0.0
      %664 = vmatprep.subr.mxu0 0.0
      %665 = vmatpush1.msra.mxu0 0.0
      %666 = vmatprep.subr.mxu0 0.0
      %667 = vmatpush1.msra.mxu0 0.0
      %668 = vmatprep.subr.mxu0 0.0
      %669 = vmatpush1.msra.mxu0 0.0
      %670 = vmatprep.mubr.f32.mxu0 0.0
      %671 = vmatmul.mubr.f32.gmra.mrb[0].mxu0 %v399
      %v672 = vpop.f32.mrb[0].mxu0
      %v673 = vadd.f32 %v568, %v672
      %v674 = vpop.f32.mrb[0].mxu0
      %675 = vmatprep.mubr.f32.mxu0 0.0
      %676 = vmatmul.mubr.f32.gmra.mrb[0].mxu0 %v401
      %v677 = vpop.f32.mrb[0].mxu0
      %v678 = vadd.f32 %v573, %v677
      %v679 = vpop.f32.mrb[0].mxu0
      %680 = vmatprep.mubr.f32.mxu0 0.0
      %681 = vmatmul.mubr.f32.gmra.mrb[0].mxu0 %v403
      %v682 = vpop.f32.mrb[0].mxu0
      %v683 = vadd.f32 %v578, %v682
      %v684 = vpop.f32.mrb[0].mxu0
      %685 = vmatprep.mubr.f32.mxu0 0.0
      %686 = vmatmul.mubr.f32.gmra.mrb[0].mxu0 %v405
      %v687 = vpop.f32.mrb[0].mxu0
      %v688 = vadd.f32 %v583, %v687
      %v689 = vpop.f32.mrb[0].mxu0
      %690 = vmatprep.mubr.f32.mxu0 0.0
      %691 = vmatmul.mubr.f32.gmra.mrb[0].mxu0 %v407
      %v692 = vpop.f32.mrb[0].mxu0
      %v693 = vadd.f32 %v588, %v692
      %v694 = vpop.f32.mrb[0].mxu0
      %695 = vmatprep.mubr.f32.mxu0 0.0
      %696 = vmatmul.mubr.f32.gmra.mrb[0].mxu0 %v409
      %v697 = vpop.f32.mrb[0].mxu0
      %v698 = vadd.f32 %v593, %v697
      %v699 = vpop.f32.mrb[0].mxu0
      %700 = vmatprep.mubr.f32.mxu0 0.0
      %701 = vmatmul.mubr.f32.gmra.mrb[0].mxu0 %v411
      %v702 = vpop.f32.mrb[0].mxu0
      %v703 = vadd.f32 %v598, %v702
      %v704 = vpop.f32.mrb[0].mxu0
      %705 = vmatprep.mubr.f32.mxu0 0.0
      %706 = vmatmul.mubr.f32.gmra.mrb[0].mxu0 %v413
      %v707 = vpop.f32.mrb[0].mxu0
      %v708 = vadd.f32 %v603, %v707
      %v709 = vpop.f32.mrb[0].mxu0
      %710 = vdwg.mxu0
      %vm711 = vcmask 1045504
      %v712 = vrot.slane %v399, 2
      %v713 = vrot.slane %v400, 2
      %v714 = vsel %vm711, %v712, %v713
      %v715 = vrot.slane %v401, 2
      %v716 = vrot.slane %v402, 2
      %v717 = vsel %vm711, %v715, %v716
      %v718 = vrot.slane %v403, 2
      %v719 = vrot.slane %v404, 2
      %v720 = vsel %vm711, %v718, %v719
      %v721 = vrot.slane %v405, 2
      %v722 = vrot.slane %v406, 2
      %v723 = vsel %vm711, %v721, %v722
      %v724 = vrot.slane %v407, 2
      %v725 = vrot.slane %v408, 2
      %v726 = vsel %vm711, %v724, %v725
      %v727 = vrot.slane %v409, 2
      %v728 = vrot.slane %v410, 2
      %v729 = vsel %vm711, %v727, %v728
      %v730 = vrot.slane %v411, 2
      %v731 = vrot.slane %v412, 2
      %v732 = vsel %vm711, %v730, %v731
      %v733 = vrot.slane %v413, 2
      %v734 = vrot.slane %v414, 2
      %v735 = vsel %vm711, %v733, %v734
      %s744 = scalar_lea.vmem %s3, 256
      %v745 = vld [vmem:[%s744] sm:$0xff]
      %v746 = vld [vmem:[%s744 + $0x8] sm:$0xff]
      %v747 = vld [vmem:[%s744 + $0x10] sm:$0xff]
      %v748 = vld [vmem:[%s744 + $0x18] sm:$0xff]
      %v749 = vld [vmem:[%s744 + $0x20] sm:$0xff]
      %v750 = vld [vmem:[%s744 + $0x28] sm:$0xff]
      %v751 = vld [vmem:[%s744 + $0x30] sm:$0xff]
      %v752 = vld [vmem:[%s744 + $0x38] sm:$0xff]
      %v753 = vld [vmem:[%s744 + $0x40] sm:$0xff]
      %v754 = vld [vmem:[%s744 + $0x48] sm:$0xff]
      %v755 = vld [vmem:[%s744 + $0x50] sm:$0xff]
      %v756 = vld [vmem:[%s744 + $0x58] sm:$0xff]
      %v757 = vld [vmem:[%s744 + $0x60] sm:$0xff]
      %v758 = vld [vmem:[%s744 + $0x68] sm:$0xff]
      %v759 = vld [vmem:[%s744 + $0x70] sm:$0xff]
      %v760 = vld [vmem:[%s744 + $0x78] sm:$0xff]
      %761 = vmatprep.subr.mxu0 0.0
      %762 = vmatpush1.msra.mxu0 %v745
      %763 = vmatprep.subr.mxu0 0.0
      %764 = vmatpush1.msra.mxu0 %v746
      %765 = vmatprep.subr.mxu0 0.0
      %766 = vmatpush1.msra.mxu0 %v747
      %767 = vmatprep.subr.mxu0 0.0
      %768 = vmatpush1.msra.mxu0 %v748
      %769 = vmatprep.subr.mxu0 0.0
      %770 = vmatpush1.msra.mxu0 %v749
      %771 = vmatprep.subr.mxu0 0.0
      %772 = vmatpush1.msra.mxu0 %v750
      %773 = vmatprep.subr.mxu0 0.0
      %774 = vmatpush1.msra.mxu0 %v751
      %775 = vmatprep.subr.mxu0 0.0
      %776 = vmatpush1.msra.mxu0 %v752
      %777 = vmatprep.subr.mxu0 0.0
      %778 = vmatpush1.msra.mxu0 %v753
      %779 = vmatprep.subr.mxu0 0.0
      %780 = vmatpush1.msra.mxu0 %v754
      %781 = vmatprep.subr.mxu0 0.0
      %782 = vmatpush1.msra.mxu0 %v755
      %783 = vmatprep.subr.mxu0 0.0
      %784 = vmatpush1.msra.mxu0 %v756
      %785 = vmatprep.subr.mxu0 0.0
      %786 = vmatpush1.msra.mxu0 %v757
      %787 = vmatprep.subr.mxu0 0.0
      %788 = vmatpush1.msra.mxu0 %v758
      %789 = vmatprep.subr.mxu0 0.0
      %790 = vmatpush1.msra.mxu0 %v759
      %791 = vmatprep.subr.mxu0 0.0
      %792 = vmatpush1.msra.mxu0 %v760
      %793 = vmatprep.subr.mxu0 0.0
      %794 = vmatpush1.msra.mxu0 0.0
      %795 = vmatprep.subr.mxu0 0.0
      %796 = vmatpush1.msra.mxu0 0.0
      %797 = vmatprep.subr.mxu0 0.0
      %798 = vmatpush1.msra.mxu0 0.0
      %799 = vmatprep.subr.mxu0 0.0
      %800 = vmatpush1.msra.mxu0 0.0
      %801 = vmatprep.subr.mxu0 0.0
      %802 = vmatpush1.msra.mxu0 0.0
      %803 = vmatprep.subr.mxu0 0.0
      %804 = vmatpush1.msra.mxu0 0.0
      %805 = vmatprep.subr.mxu0 0.0
      %806 = vmatpush1.msra.mxu0 0.0
      %807 = vmatprep.subr.mxu0 0.0
      %808 = vmatpush1.msra.mxu0 0.0
      %809 = vmatprep.subr.mxu0 0.0
      %810 = vmatpush1.msra.mxu0 0.0
      %811 = vmatprep.subr.mxu0 0.0
      %812 = vmatpush1.msra.mxu0 0.0
      %813 = vmatprep.subr.mxu0 0.0
      %814 = vmatpush1.msra.mxu0 0.0
      %815 = vmatprep.subr.mxu0 0.0
      %816 = vmatpush1.msra.mxu0 0.0
      %817 = vmatprep.subr.mxu0 0.0
      %818 = vmatpush1.msra.mxu0 0.0
      %819 = vmatprep.subr.mxu0 0.0
      %820 = vmatpush1.msra.mxu0 0.0
      %821 = vmatprep.subr.mxu0 0.0
      %822 = vmatpush1.msra.mxu0 0.0
      %823 = vmatprep.subr.mxu0 0.0
      %824 = vmatpush1.msra.mxu0 0.0
      %825 = vmatprep.mubr.f32.mxu0 0.0
      %826 = vmatmul.mubr.f32.gmra.mrb[0].mxu0 %v714
      %v827 = vpop.f32.mrb[0].mxu0
      %v828 = vadd.f32 0.0, %v827
      %v829 = vpop.f32.mrb[0].mxu0
      %830 = vmatprep.mubr.f32.mxu0 0.0
      %831 = vmatmul.mubr.f32.gmra.mrb[0].mxu0 %v717
      %v832 = vpop.f32.mrb[0].mxu0
      %v833 = vadd.f32 0.0, %v832
      %v834 = vpop.f32.mrb[0].mxu0
      %835 = vmatprep.mubr.f32.mxu0 0.0
      %836 = vmatmul.mubr.f32.gmra.mrb[0].mxu0 %v720
      %v837 = vpop.f32.mrb[0].mxu0
      %v838 = vadd.f32 0.0, %v837
      %v839 = vpop.f32.mrb[0].mxu0
      %840 = vmatprep.mubr.f32.mxu0 0.0
      %841 = vmatmul.mubr.f32.gmra.mrb[0].mxu0 %v723
      %v842 = vpop.f32.mrb[0].mxu0
      %v843 = vadd.f32 0.0, %v842
      %v844 = vpop.f32.mrb[0].mxu0
      %845 = vmatprep.mubr.f32.mxu0 0.0
      %846 = vmatmul.mubr.f32.gmra.mrb[0].mxu0 %v726
      %v847 = vpop.f32.mrb[0].mxu0
      %v848 = vadd.f32 0.0, %v847
      %v849 = vpop.f32.mrb[0].mxu0
      %850 = vmatprep.mubr.f32.mxu0 0.0
      %851 = vmatmul.mubr.f32.gmra.mrb[0].mxu0 %v729
      %v852 = vpop.f32.mrb[0].mxu0
      %v853 = vadd.f32 0.0, %v852
      %v854 = vpop.f32.mrb[0].mxu0
      %855 = vmatprep.mubr.f32.mxu0 0.0
      %856 = vmatmul.mubr.f32.gmra.mrb[0].mxu0 %v732
      %v857 = vpop.f32.mrb[0].mxu0
      %v858 = vadd.f32 0.0, %v857
      %v859 = vpop.f32.mrb[0].mxu0
      %860 = vmatprep.mubr.f32.mxu0 0.0
      %861 = vmatmul.mubr.f32.gmra.mrb[0].mxu0 %v735
      %v862 = vpop.f32.mrb[0].mxu0
      %v863 = vadd.f32 0.0, %v862
      %v864 = vpop.f32.mrb[0].mxu0
      %865 = vdwg.mxu0
      %v866 = vadd.f32 %v673, %v828
      %v867 = vadd.f32 %v678, %v833
      %v868 = vadd.f32 %v683, %v838
      %v869 = vadd.f32 %v688, %v843
      %v870 = vadd.f32 %v693, %v848
      %v871 = vadd.f32 %v698, %v853
      %v872 = vadd.f32 %v703, %v858
      %v873 = vadd.f32 %v708, %v863
      %s874 = scalar_lea.vmem %s3, 384
      %v875 = vld [vmem:[%s874] sm:$0xff]
      %v876 = vld [vmem:[%s874 + $0x8] sm:$0xff]
      %v877 = vld [vmem:[%s874 + $0x10] sm:$0xff]
      %v878 = vld [vmem:[%s874 + $0x18] sm:$0xff]
      %v879 = vld [vmem:[%s874 + $0x20] sm:$0xff]
      %v880 = vld [vmem:[%s874 + $0x28] sm:$0xff]
      %v881 = vld [vmem:[%s874 + $0x30] sm:$0xff]
      %v882 = vld [vmem:[%s874 + $0x38] sm:$0xff]
      %v883 = vld [vmem:[%s874 + $0x40] sm:$0xff]
      %v884 = vld [vmem:[%s874 + $0x48] sm:$0xff]
      %v885 = vld [vmem:[%s874 + $0x50] sm:$0xff]
      %v886 = vld [vmem:[%s874 + $0x58] sm:$0xff]
      %v887 = vld [vmem:[%s874 + $0x60] sm:$0xff]
      %v888 = vld [vmem:[%s874 + $0x68] sm:$0xff]
      %v889 = vld [vmem:[%s874 + $0x70] sm:$0xff]
      %v890 = vld [vmem:[%s874 + $0x78] sm:$0xff]
      %891 = vmatprep.subr.mxu0 0.0
      %892 = vmatpush1.msra.mxu0 %v875
      %893 = vmatprep.subr.mxu0 0.0
      %894 = vmatpush1.msra.mxu0 %v876
      %895 = vmatprep.subr.mxu0 0.0
      %896 = vmatpush1.msra.mxu0 %v877
      %897 = vmatprep.subr.mxu0 0.0
      %898 = vmatpush1.msra.mxu0 %v878
      %899 = vmatprep.subr.mxu0 0.0
      %900 = vmatpush1.msra.mxu0 %v879
      %901 = vmatprep.subr.mxu0 0.0
      %902 = vmatpush1.msra.mxu0 %v880
      %903 = vmatprep.subr.mxu0 0.0
      %904 = vmatpush1.msra.mxu0 %v881
      %905 = vmatprep.subr.mxu0 0.0
      %906 = vmatpush1.msra.mxu0 %v882
      %907 = vmatprep.subr.mxu0 0.0
      %908 = vmatpush1.msra.mxu0 %v883
      %909 = vmatprep.subr.mxu0 0.0
      %910 = vmatpush1.msra.mxu0 %v884
      %911 = vmatprep.subr.mxu0 0.0
      %912 = vmatpush1.msra.mxu0 %v885
      %913 = vmatprep.subr.mxu0 0.0
      %914 = vmatpush1.msra.mxu0 %v886
      %915 = vmatprep.subr.mxu0 0.0
      %916 = vmatpush1.msra.mxu0 %v887
      %917 = vmatprep.subr.mxu0 0.0
      %918 = vmatpush1.msra.mxu0 %v888
      %919 = vmatprep.subr.mxu0 0.0
      %920 = vmatpush1.msra.mxu0 %v889
      %921 = vmatprep.subr.mxu0 0.0
      %922 = vmatpush1.msra.mxu0 %v890
      %923 = vmatprep.subr.mxu0 0.0
      %924 = vmatpush1.msra.mxu0 0.0
      %925 = vmatprep.subr.mxu0 0.0
      %926 = vmatpush1.msra.mxu0 0.0
      %927 = vmatprep.subr.mxu0 0.0
      %928 = vmatpush1.msra.mxu0 0.0
      %929 = vmatprep.subr.mxu0 0.0
      %930 = vmatpush1.msra.mxu0 0.0
      %931 = vmatprep.subr.mxu0 0.0
      %932 = vmatpush1.msra.mxu0 0.0
      %933 = vmatprep.subr.mxu0 0.0
      %934 = vmatpush1.msra.mxu0 0.0
      %935 = vmatprep.subr.mxu0 0.0
      %936 = vmatpush1.msra.mxu0 0.0
      %937 = vmatprep.subr.mxu0 0.0
      %938 = vmatpush1.msra.mxu0 0.0
      %939 = vmatprep.subr.mxu0 0.0
      %940 = vmatpush1.msra.mxu0 0.0
      %941 = vmatprep.subr.mxu0 0.0
      %942 = vmatpush1.msra.mxu0 0.0
      %943 = vmatprep.subr.mxu0 0.0
      %944 = vmatpush1.msra.mxu0 0.0
      %945 = vmatprep.subr.mxu0 0.0
      %946 = vmatpush1.msra.mxu0 0.0
      %947 = vmatprep.subr.mxu0 0.0
      %948 = vmatpush1.msra.mxu0 0.0
      %949 = vmatprep.subr.mxu0 0.0
      %950 = vmatpush1.msra.mxu0 0.0
      %951 = vmatprep.subr.mxu0 0.0
      %952 = vmatpush1.msra.mxu0 0.0
      %953 = vmatprep.subr.mxu0 0.0
      %954 = vmatpush1.msra.mxu0 0.0
      %955 = vmatprep.mubr.f32.mxu0 0.0
      %956 = vmatmul.mubr.f32.gmra.mrb[0].mxu0 %v401
      %v957 = vpop.f32.mrb[0].mxu0
      %v958 = vadd.f32 0.0, %v957
      %v959 = vpop.f32.mrb[0].mxu0
      %960 = vmatprep.mubr.f32.mxu0 0.0
      %961 = vmatmul.mubr.f32.gmra.mrb[0].mxu0 %v403
      %v962 = vpop.f32.mrb[0].mxu0
      %v963 = vadd.f32 0.0, %v962
      %v964 = vpop.f32.mrb[0].mxu0
      %965 = vmatprep.mubr.f32.mxu0 0.0
      %966 = vmatmul.mubr.f32.gmra.mrb[0].mxu0 %v405
      %v967 = vpop.f32.mrb[0].mxu0
      %v968 = vadd.f32 0.0, %v967
      %v969 = vpop.f32.mrb[0].mxu0
      %970 = vmatprep.mubr.f32.mxu0 0.0
      %971 = vmatmul.mubr.f32.gmra.mrb[0].mxu0 %v407
      %v972 = vpop.f32.mrb[0].mxu0
      %v973 = vadd.f32 0.0, %v972
      %v974 = vpop.f32.mrb[0].mxu0
      %975 = vmatprep.mubr.f32.mxu0 0.0
      %976 = vmatmul.mubr.f32.gmra.mrb[0].mxu0 %v409
      %v977 = vpop.f32.mrb[0].mxu0
      %v978 = vadd.f32 0.0, %v977
      %v979 = vpop.f32.mrb[0].mxu0
      %980 = vmatprep.mubr.f32.mxu0 0.0
      %981 = vmatmul.mubr.f32.gmra.mrb[0].mxu0 %v411
      %v982 = vpop.f32.mrb[0].mxu0
      %v983 = vadd.f32 0.0, %v982
      %v984 = vpop.f32.mrb[0].mxu0
      %985 = vmatprep.mubr.f32.mxu0 0.0
      %986 = vmatmul.mubr.f32.gmra.mrb[0].mxu0 %v413
      %v987 = vpop.f32.mrb[0].mxu0
      %v988 = vadd.f32 0.0, %v987
      %v989 = vpop.f32.mrb[0].mxu0
      %990 = vmatprep.mubr.f32.mxu0 0.0
      %991 = vmatmul.mubr.f32.gmra.mrb[0].mxu0 %v415
      %v992 = vpop.f32.mrb[0].mxu0
      %v993 = vadd.f32 0.0, %v992
      %v994 = vpop.f32.mrb[0].mxu0
      %995 = vdwg.mxu0
      %v996 = vadd.f32 %v866, %v958
      %v997 = vadd.f32 %v867, %v963
      %v998 = vadd.f32 %v868, %v968
      %v999 = vadd.f32 %v869, %v973
      %v1000 = vadd.f32 %v870, %v978
      %v1001 = vadd.f32 %v871, %v983
      %v1002 = vadd.f32 %v872, %v988
      %v1003 = vadd.f32 %v873, %v993
      %v1006 = vrot.slane %v415, 1
      %v1007 = vrot.slane %v416, 1
      %v1008 = vsel %vm451, %v1006, %v1007
      %s1010 = scalar_lea.vmem %s3, 512
      %v1011 = vld [vmem:[%s1010] sm:$0xff]
      %v1012 = vld [vmem:[%s1010 + $0x8] sm:$0xff]
      %v1013 = vld [vmem:[%s1010 + $0x10] sm:$0xff]
      %v1014 = vld [vmem:[%s1010 + $0x18] sm:$0xff]
      %v1015 = vld [vmem:[%s1010 + $0x20] sm:$0xff]
      %v1016 = vld [vmem:[%s1010 + $0x28] sm:$0xff]
      %v1017 = vld [vmem:[%s1010 + $0x30] sm:$0xff]
      %v1018 = vld [vmem:[%s1010 + $0x38] sm:$0xff]
      %v1019 = vld [vmem:[%s1010 + $0x40] sm:$0xff]
      %v1020 = vld [vmem:[%s1010 + $0x48] sm:$0xff]
      %v1021 = vld [vmem:[%s1010 + $0x50] sm:$0xff]
      %v1022 = vld [vmem:[%s1010 + $0x58] sm:$0xff]
      %v1023 = vld [vmem:[%s1010 + $0x60] sm:$0xff]
      %v1024 = vld [vmem:[%s1010 + $0x68] sm:$0xff]
      %v1025 = vld [vmem:[%s1010 + $0x70] sm:$0xff]
      %v1026 = vld [vmem:[%s1010 + $0x78] sm:$0xff]
      %1027 = vmatprep.subr.mxu0 0.0
      %1028 = vmatpush1.msra.mxu0 %v1011
      %1029 = vmatprep.subr.mxu0 0.0
      %1030 = vmatpush1.msra.mxu0 %v1012
      %1031 = vmatprep.subr.mxu0 0.0
      %1032 = vmatpush1.msra.mxu0 %v1013
      %1033 = vmatprep.subr.mxu0 0.0
      %1034 = vmatpush1.msra.mxu0 %v1014
      %1035 = vmatprep.subr.mxu0 0.0
      %1036 = vmatpush1.msra.mxu0 %v1015
      %1037 = vmatprep.subr.mxu0 0.0
      %1038 = vmatpush1.msra.mxu0 %v1016
      %1039 = vmatprep.subr.mxu0 0.0
      %1040 = vmatpush1.msra.mxu0 %v1017
      %1041 = vmatprep.subr.mxu0 0.0
      %1042 = vmatpush1.msra.mxu0 %v1018
      %1043 = vmatprep.subr.mxu0 0.0
      %1044 = vmatpush1.msra.mxu0 %v1019
      %1045 = vmatprep.subr.mxu0 0.0
      %1046 = vmatpush1.msra.mxu0 %v1020
      %1047 = vmatprep.subr.mxu0 0.0
      %1048 = vmatpush1.msra.mxu0 %v1021
      %1049 = vmatprep.subr.mxu0 0.0
      %1050 = vmatpush1.msra.mxu0 %v1022
      %1051 = vmatprep.subr.mxu0 0.0
      %1052 = vmatpush1.msra.mxu0 %v1023
      %1053 = vmatprep.subr.mxu0 0.0
      %1054 = vmatpush1.msra.mxu0 %v1024
      %1055 = vmatprep.subr.mxu0 0.0
      %1056 = vmatpush1.msra.mxu0 %v1025
      %1057 = vmatprep.subr.mxu0 0.0
      %1058 = vmatpush1.msra.mxu0 %v1026
      %1059 = vmatprep.subr.mxu0 0.0
      %1060 = vmatpush1.msra.mxu0 0.0
      %1061 = vmatprep.subr.mxu0 0.0
      %1062 = vmatpush1.msra.mxu0 0.0
      %1063 = vmatprep.subr.mxu0 0.0
      %1064 = vmatpush1.msra.mxu0 0.0
      %1065 = vmatprep.subr.mxu0 0.0
      %1066 = vmatpush1.msra.mxu0 0.0
      %1067 = vmatprep.subr.mxu0 0.0
      %1068 = vmatpush1.msra.mxu0 0.0
      %1069 = vmatprep.subr.mxu0 0.0
      %1070 = vmatpush1.msra.mxu0 0.0
      %1071 = vmatprep.subr.mxu0 0.0
      %1072 = vmatpush1.msra.mxu0 0.0
      %1073 = vmatprep.subr.mxu0 0.0
      %1074 = vmatpush1.msra.mxu0 0.0
      %1075 = vmatprep.subr.mxu0 0.0
      %1076 = vmatpush1.msra.mxu0 0.0
      %1077 = vmatprep.subr.mxu0 0.0
      %1078 = vmatpush1.msra.mxu0 0.0
      %1079 = vmatprep.subr.mxu0 0.0
      %1080 = vmatpush1.msra.mxu0 0.0
      %1081 = vmatprep.subr.mxu0 0.0
      %1082 = vmatpush1.msra.mxu0 0.0
      %1083 = vmatprep.subr.mxu0 0.0
      %1084 = vmatpush1.msra.mxu0 0.0
      %1085 = vmatprep.subr.mxu0 0.0
      %1086 = vmatpush1.msra.mxu0 0.0
      %1087 = vmatprep.subr.mxu0 0.0
      %1088 = vmatpush1.msra.mxu0 0.0
      %1089 = vmatprep.subr.mxu0 0.0
      %1090 = vmatpush1.msra.mxu0 0.0
      %1091 = vmatprep.mubr.f32.mxu0 0.0
      %1092 = vmatmul.mubr.f32.gmra.mrb[0].mxu0 %v457
      %v1093 = vpop.f32.mrb[0].mxu0
      %v1094 = vadd.f32 0.0, %v1093
      %v1095 = vpop.f32.mrb[0].mxu0
      %1096 = vmatprep.mubr.f32.mxu0 0.0
      %1097 = vmatmul.mubr.f32.gmra.mrb[0].mxu0 %v460
      %v1098 = vpop.f32.mrb[0].mxu0
      %v1099 = vadd.f32 0.0, %v1098
      %v1100 = vpop.f32.mrb[0].mxu0
      %1101 = vmatprep.mubr.f32.mxu0 0.0
      %1102 = vmatmul.mubr.f32.gmra.mrb[0].mxu0 %v463
      %v1103 = vpop.f32.mrb[0].mxu0
      %v1104 = vadd.f32 0.0, %v1103
      %v1105 = vpop.f32.mrb[0].mxu0
      %1106 = vmatprep.mubr.f32.mxu0 0.0
      %1107 = vmatmul.mubr.f32.gmra.mrb[0].mxu0 %v466
      %v1108 = vpop.f32.mrb[0].mxu0
      %v1109 = vadd.f32 0.0, %v1108
      %v1110 = vpop.f32.mrb[0].mxu0
      %1111 = vmatprep.mubr.f32.mxu0 0.0
      %1112 = vmatmul.mubr.f32.gmra.mrb[0].mxu0 %v469
      %v1113 = vpop.f32.mrb[0].mxu0
      %v1114 = vadd.f32 0.0, %v1113
      %v1115 = vpop.f32.mrb[0].mxu0
      %1116 = vmatprep.mubr.f32.mxu0 0.0
      %1117 = vmatmul.mubr.f32.gmra.mrb[0].mxu0 %v472
      %v1118 = vpop.f32.mrb[0].mxu0
      %v1119 = vadd.f32 0.0, %v1118
      %v1120 = vpop.f32.mrb[0].mxu0
      %1121 = vmatprep.mubr.f32.mxu0 0.0
      %1122 = vmatmul.mubr.f32.gmra.mrb[0].mxu0 %v475
      %v1123 = vpop.f32.mrb[0].mxu0
      %v1124 = vadd.f32 0.0, %v1123
      %v1125 = vpop.f32.mrb[0].mxu0
      %1126 = vmatprep.mubr.f32.mxu0 0.0
      %1127 = vmatmul.mubr.f32.gmra.mrb[0].mxu0 %v1008
      %v1128 = vpop.f32.mrb[0].mxu0
      %v1129 = vadd.f32 0.0, %v1128
      %v1130 = vpop.f32.mrb[0].mxu0
      %1131 = vdwg.mxu0
      %v1132 = vadd.f32 %v996, %v1094
      %v1133 = vadd.f32 %v997, %v1099
      %v1134 = vadd.f32 %v998, %v1104
      %v1135 = vadd.f32 %v999, %v1109
      %v1136 = vadd.f32 %v1000, %v1114
      %v1137 = vadd.f32 %v1001, %v1119
      %v1138 = vadd.f32 %v1002, %v1124
      %v1139 = vadd.f32 %v1003, %v1129
      %v1140 = vrot.slane %v415, 2
      %v1141 = vrot.slane %v416, 2
      %v1142 = vsel %vm711, %v1140, %v1141
      %s1144 = scalar_lea.vmem %s3, 640
      %v1145 = vld [vmem:[%s1144] sm:$0xff]
      %v1146 = vld [vmem:[%s1144 + $0x8] sm:$0xff]
      %v1147 = vld [vmem:[%s1144 + $0x10] sm:$0xff]
      %v1148 = vld [vmem:[%s1144 + $0x18] sm:$0xff]
      %v1149 = vld [vmem:[%s1144 + $0x20] sm:$0xff]
      %v1150 = vld [vmem:[%s1144 + $0x28] sm:$0xff]
      %v1151 = vld [vmem:[%s1144 + $0x30] sm:$0xff]
      %v1152 = vld [vmem:[%s1144 + $0x38] sm:$0xff]
      %v1153 = vld [vmem:[%s1144 + $0x40] sm:$0xff]
      %v1154 = vld [vmem:[%s1144 + $0x48] sm:$0xff]
      %v1155 = vld [vmem:[%s1144 + $0x50] sm:$0xff]
      %v1156 = vld [vmem:[%s1144 + $0x58] sm:$0xff]
      %v1157 = vld [vmem:[%s1144 + $0x60] sm:$0xff]
      %v1158 = vld [vmem:[%s1144 + $0x68] sm:$0xff]
      %v1159 = vld [vmem:[%s1144 + $0x70] sm:$0xff]
      %v1160 = vld [vmem:[%s1144 + $0x78] sm:$0xff]
      %1161 = vmatprep.subr.mxu0 0.0
      %1162 = vmatpush1.msra.mxu0 %v1145
      %1163 = vmatprep.subr.mxu0 0.0
      %1164 = vmatpush1.msra.mxu0 %v1146
      %1165 = vmatprep.subr.mxu0 0.0
      %1166 = vmatpush1.msra.mxu0 %v1147
      %1167 = vmatprep.subr.mxu0 0.0
      %1168 = vmatpush1.msra.mxu0 %v1148
      %1169 = vmatprep.subr.mxu0 0.0
      %1170 = vmatpush1.msra.mxu0 %v1149
      %1171 = vmatprep.subr.mxu0 0.0
      %1172 = vmatpush1.msra.mxu0 %v1150
      %1173 = vmatprep.subr.mxu0 0.0
      %1174 = vmatpush1.msra.mxu0 %v1151
      %1175 = vmatprep.subr.mxu0 0.0
      %1176 = vmatpush1.msra.mxu0 %v1152
      %1177 = vmatprep.subr.mxu0 0.0
      %1178 = vmatpush1.msra.mxu0 %v1153
      %1179 = vmatprep.subr.mxu0 0.0
      %1180 = vmatpush1.msra.mxu0 %v1154
      %1181 = vmatprep.subr.mxu0 0.0
      %1182 = vmatpush1.msra.mxu0 %v1155
      %1183 = vmatprep.subr.mxu0 0.0
      %1184 = vmatpush1.msra.mxu0 %v1156
      %1185 = vmatprep.subr.mxu0 0.0
      %1186 = vmatpush1.msra.mxu0 %v1157
      %1187 = vmatprep.subr.mxu0 0.0
      %1188 = vmatpush1.msra.mxu0 %v1158
      %1189 = vmatprep.subr.mxu0 0.0
      %1190 = vmatpush1.msra.mxu0 %v1159
      %1191 = vmatprep.subr.mxu0 0.0
      %1192 = vmatpush1.msra.mxu0 %v1160
      %1193 = vmatprep.subr.mxu0 0.0
      %1194 = vmatpush1.msra.mxu0 0.0
      %1195 = vmatprep.subr.mxu0 0.0
      %1196 = vmatpush1.msra.mxu0 0.0
      %1197 = vmatprep.subr.mxu0 0.0
      %1198 = vmatpush1.msra.mxu0 0.0
      %1199 = vmatprep.subr.mxu0 0.0
      %1200 = vmatpush1.msra.mxu0 0.0
      %1201 = vmatprep.subr.mxu0 0.0
      %1202 = vmatpush1.msra.mxu0 0.0
      %1203 = vmatprep.subr.mxu0 0.0
      %1204 = vmatpush1.msra.mxu0 0.0
      %1205 = vmatprep.subr.mxu0 0.0
      %1206 = vmatpush1.msra.mxu0 0.0
      %1207 = vmatprep.subr.mxu0 0.0
      %1208 = vmatpush1.msra.mxu0 0.0
      %1209 = vmatprep.subr.mxu0 0.0
      %1210 = vmatpush1.msra.mxu0 0.0
      %1211 = vmatprep.subr.mxu0 0.0
      %1212 = vmatpush1.msra.mxu0 0.0
      %1213 = vmatprep.subr.mxu0 0.0
      %1214 = vmatpush1.msra.mxu0 0.0
      %1215 = vmatprep.subr.mxu0 0.0
      %1216 = vmatpush1.msra.mxu0 0.0
      %1217 = vmatprep.subr.mxu0 0.0
      %1218 = vmatpush1.msra.mxu0 0.0
      %1219 = vmatprep.subr.mxu0 0.0
      %1220 = vmatpush1.msra.mxu0 0.0
      %1221 = vmatprep.subr.mxu0 0.0
      %1222 = vmatpush1.msra.mxu0 0.0
      %1223 = vmatprep.subr.mxu0 0.0
      %1224 = vmatpush1.msra.mxu0 0.0
      %1225 = vmatprep.mubr.f32.mxu0 0.0
      %1226 = vmatmul.mubr.f32.gmra.mrb[0].mxu0 %v717
      %v1227 = vpop.f32.mrb[0].mxu0
      %v1228 = vadd.f32 0.0, %v1227
      %v1229 = vpop.f32.mrb[0].mxu0
      %1230 = vmatprep.mubr.f32.mxu0 0.0
      %1231 = vmatmul.mubr.f32.gmra.mrb[0].mxu0 %v720
      %v1232 = vpop.f32.mrb[0].mxu0
      %v1233 = vadd.f32 0.0, %v1232
      %v1234 = vpop.f32.mrb[0].mxu0
      %1235 = vmatprep.mubr.f32.mxu0 0.0
      %1236 = vmatmul.mubr.f32.gmra.mrb[0].mxu0 %v723
      %v1237 = vpop.f32.mrb[0].mxu0
      %v1238 = vadd.f32 0.0, %v1237
      %v1239 = vpop.f32.mrb[0].mxu0
      %1240 = vmatprep.mubr.f32.mxu0 0.0
      %1241 = vmatmul.mubr.f32.gmra.mrb[0].mxu0 %v726
      %v1242 = vpop.f32.mrb[0].mxu0
      %v1243 = vadd.f32 0.0, %v1242
      %v1244 = vpop.f32.mrb[0].mxu0
      %1245 = vmatprep.mubr.f32.mxu0 0.0
      %1246 = vmatmul.mubr.f32.gmra.mrb[0].mxu0 %v729
      %v1247 = vpop.f32.mrb[0].mxu0
      %v1248 = vadd.f32 0.0, %v1247
      %v1249 = vpop.f32.mrb[0].mxu0
      %1250 = vmatprep.mubr.f32.mxu0 0.0
      %1251 = vmatmul.mubr.f32.gmra.mrb[0].mxu0 %v732
      %v1252 = vpop.f32.mrb[0].mxu0
      %v1253 = vadd.f32 0.0, %v1252
      %v1254 = vpop.f32.mrb[0].mxu0
      %1255 = vmatprep.mubr.f32.mxu0 0.0
      %1256 = vmatmul.mubr.f32.gmra.mrb[0].mxu0 %v735
      %v1257 = vpop.f32.mrb[0].mxu0
      %v1258 = vadd.f32 0.0, %v1257
      %v1259 = vpop.f32.mrb[0].mxu0
      %1260 = vmatprep.mubr.f32.mxu0 0.0
      %1261 = vmatmul.mubr.f32.gmra.mrb[0].mxu0 %v1142
      %v1262 = vpop.f32.mrb[0].mxu0
      %v1263 = vadd.f32 0.0, %v1262
      %v1264 = vpop.f32.mrb[0].mxu0
      %1265 = vdwg.mxu0
      %v1266 = vadd.f32 %v1132, %v1228
      %v1267 = vadd.f32 %v1133, %v1233
      %v1268 = vadd.f32 %v1134, %v1238
      %v1269 = vadd.f32 %v1135, %v1243
      %v1270 = vadd.f32 %v1136, %v1248
      %v1271 = vadd.f32 %v1137, %v1253
      %v1272 = vadd.f32 %v1138, %v1258
      %v1273 = vadd.f32 %v1139, %v1263
      %s1274 = scalar_lea.vmem %s3, 768
      %v1275 = vld [vmem:[%s1274] sm:$0xff]
      %v1276 = vld [vmem:[%s1274 + $0x8] sm:$0xff]
      %v1277 = vld [vmem:[%s1274 + $0x10] sm:$0xff]
      %v1278 = vld [vmem:[%s1274 + $0x18] sm:$0xff]
      %v1279 = vld [vmem:[%s1274 + $0x20] sm:$0xff]
      %v1280 = vld [vmem:[%s1274 + $0x28] sm:$0xff]
      %v1281 = vld [vmem:[%s1274 + $0x30] sm:$0xff]
      %v1282 = vld [vmem:[%s1274 + $0x38] sm:$0xff]
      %v1283 = vld [vmem:[%s1274 + $0x40] sm:$0xff]
      %v1284 = vld [vmem:[%s1274 + $0x48] sm:$0xff]
      %v1285 = vld [vmem:[%s1274 + $0x50] sm:$0xff]
      %v1286 = vld [vmem:[%s1274 + $0x58] sm:$0xff]
      %v1287 = vld [vmem:[%s1274 + $0x60] sm:$0xff]
      %v1288 = vld [vmem:[%s1274 + $0x68] sm:$0xff]
      %v1289 = vld [vmem:[%s1274 + $0x70] sm:$0xff]
      %v1290 = vld [vmem:[%s1274 + $0x78] sm:$0xff]
      %1291 = vmatprep.subr.mxu0 0.0
      %1292 = vmatpush1.msra.mxu0 %v1275
      %1293 = vmatprep.subr.mxu0 0.0
      %1294 = vmatpush1.msra.mxu0 %v1276
      %1295 = vmatprep.subr.mxu0 0.0
      %1296 = vmatpush1.msra.mxu0 %v1277
      %1297 = vmatprep.subr.mxu0 0.0
      %1298 = vmatpush1.msra.mxu0 %v1278
      %1299 = vmatprep.subr.mxu0 0.0
      %1300 = vmatpush1.msra.mxu0 %v1279
      %1301 = vmatprep.subr.mxu0 0.0
      %1302 = vmatpush1.msra.mxu0 %v1280
      %1303 = vmatprep.subr.mxu0 0.0
      %1304 = vmatpush1.msra.mxu0 %v1281
      %1305 = vmatprep.subr.mxu0 0.0
      %1306 = vmatpush1.msra.mxu0 %v1282
      %1307 = vmatprep.subr.mxu0 0.0
      %1308 = vmatpush1.msra.mxu0 %v1283
      %1309 = vmatprep.subr.mxu0 0.0
      %1310 = vmatpush1.msra.mxu0 %v1284
      %1311 = vmatprep.subr.mxu0 0.0
      %1312 = vmatpush1.msra.mxu0 %v1285
      %1313 = vmatprep.subr.mxu0 0.0
      %1314 = vmatpush1.msra.mxu0 %v1286
      %1315 = vmatprep.subr.mxu0 0.0
      %1316 = vmatpush1.msra.mxu0 %v1287
      %1317 = vmatprep.subr.mxu0 0.0
      %1318 = vmatpush1.msra.mxu0 %v1288
      %1319 = vmatprep.subr.mxu0 0.0
      %1320 = vmatpush1.msra.mxu0 %v1289
      %1321 = vmatprep.subr.mxu0 0.0
      %1322 = vmatpush1.msra.mxu0 %v1290
      %1323 = vmatprep.subr.mxu0 0.0
      %1324 = vmatpush1.msra.mxu0 0.0
      %1325 = vmatprep.subr.mxu0 0.0
      %1326 = vmatpush1.msra.mxu0 0.0
      %1327 = vmatprep.subr.mxu0 0.0
      %1328 = vmatpush1.msra.mxu0 0.0
      %1329 = vmatprep.subr.mxu0 0.0
      %1330 = vmatpush1.msra.mxu0 0.0
      %1331 = vmatprep.subr.mxu0 0.0
      %1332 = vmatpush1.msra.mxu0 0.0
      %1333 = vmatprep.subr.mxu0 0.0
      %1334 = vmatpush1.msra.mxu0 0.0
      %1335 = vmatprep.subr.mxu0 0.0
      %1336 = vmatpush1.msra.mxu0 0.0
      %1337 = vmatprep.subr.mxu0 0.0
      %1338 = vmatpush1.msra.mxu0 0.0
      %1339 = vmatprep.subr.mxu0 0.0
      %1340 = vmatpush1.msra.mxu0 0.0
      %1341 = vmatprep.subr.mxu0 0.0
      %1342 = vmatpush1.msra.mxu0 0.0
      %1343 = vmatprep.subr.mxu0 0.0
      %1344 = vmatpush1.msra.mxu0 0.0
      %1345 = vmatprep.subr.mxu0 0.0
      %1346 = vmatpush1.msra.mxu0 0.0
      %1347 = vmatprep.subr.mxu0 0.0
      %1348 = vmatpush1.msra.mxu0 0.0
      %1349 = vmatprep.subr.mxu0 0.0
      %1350 = vmatpush1.msra.mxu0 0.0
      %1351 = vmatprep.subr.mxu0 0.0
      %1352 = vmatpush1.msra.mxu0 0.0
      %1353 = vmatprep.subr.mxu0 0.0
      %1354 = vmatpush1.msra.mxu0 0.0
      %1355 = vmatprep.mubr.f32.mxu0 0.0
      %1356 = vmatmul.mubr.f32.gmra.mrb[0].mxu0 %v403
      %v1357 = vpop.f32.mrb[0].mxu0
      %v1358 = vadd.f32 0.0, %v1357
      %v1359 = vpop.f32.mrb[0].mxu0
      %1360 = vmatprep.mubr.f32.mxu0 0.0
      %1361 = vmatmul.mubr.f32.gmra.mrb[0].mxu0 %v405
      %v1362 = vpop.f32.mrb[0].mxu0
      %v1363 = vadd.f32 0.0, %v1362
      %v1364 = vpop.f32.mrb[0].mxu0
      %1365 = vmatprep.mubr.f32.mxu0 0.0
      %1366 = vmatmul.mubr.f32.gmra.mrb[0].mxu0 %v407
      %v1367 = vpop.f32.mrb[0].mxu0
      %v1368 = vadd.f32 0.0, %v1367
      %v1369 = vpop.f32.mrb[0].mxu0
      %1370 = vmatprep.mubr.f32.mxu0 0.0
      %1371 = vmatmul.mubr.f32.gmra.mrb[0].mxu0 %v409
      %v1372 = vpop.f32.mrb[0].mxu0
      %v1373 = vadd.f32 0.0, %v1372
      %v1374 = vpop.f32.mrb[0].mxu0
      %1375 = vmatprep.mubr.f32.mxu0 0.0
      %1376 = vmatmul.mubr.f32.gmra.mrb[0].mxu0 %v411
      %v1377 = vpop.f32.mrb[0].mxu0
      %v1378 = vadd.f32 0.0, %v1377
      %v1379 = vpop.f32.mrb[0].mxu0
      %1380 = vmatprep.mubr.f32.mxu0 0.0
      %1381 = vmatmul.mubr.f32.gmra.mrb[0].mxu0 %v413
      %v1382 = vpop.f32.mrb[0].mxu0
      %v1383 = vadd.f32 0.0, %v1382
      %v1384 = vpop.f32.mrb[0].mxu0
      %1385 = vmatprep.mubr.f32.mxu0 0.0
      %1386 = vmatmul.mubr.f32.gmra.mrb[0].mxu0 %v415
      %v1387 = vpop.f32.mrb[0].mxu0
      %v1388 = vadd.f32 0.0, %v1387
      %v1389 = vpop.f32.mrb[0].mxu0
      %1390 = vmatprep.mubr.f32.mxu0 0.0
      %1391 = vmatmul.mubr.f32.gmra.mrb[0].mxu0 %v417
      %v1392 = vpop.f32.mrb[0].mxu0
      %v1393 = vadd.f32 0.0, %v1392
      %v1394 = vpop.f32.mrb[0].mxu0
      %1395 = vdwg.mxu0
      %v1396 = vadd.f32 %v1266, %v1358
      %v1397 = vadd.f32 %v1267, %v1363
      %v1398 = vadd.f32 %v1268, %v1368
      %v1399 = vadd.f32 %v1269, %v1373
      %v1400 = vadd.f32 %v1270, %v1378
      %v1401 = vadd.f32 %v1271, %v1383
      %v1402 = vadd.f32 %v1272, %v1388
      %v1403 = vadd.f32 %v1273, %v1393
      %v1406 = vrot.slane %v417, 1
      %v1407 = vrot.slane %v418, 1
      %v1408 = vsel %vm451, %v1406, %v1407
      %s1410 = scalar_lea.vmem %s3, 896
      %v1411 = vld [vmem:[%s1410] sm:$0xff]
      %v1412 = vld [vmem:[%s1410 + $0x8] sm:$0xff]
      %v1413 = vld [vmem:[%s1410 + $0x10] sm:$0xff]
      %v1414 = vld [vmem:[%s1410 + $0x18] sm:$0xff]
      %v1415 = vld [vmem:[%s1410 + $0x20] sm:$0xff]
      %v1416 = vld [vmem:[%s1410 + $0x28] sm:$0xff]
      %v1417 = vld [vmem:[%s1410 + $0x30] sm:$0xff]
      %v1418 = vld [vmem:[%s1410 + $0x38] sm:$0xff]
      %v1419 = vld [vmem:[%s1410 + $0x40] sm:$0xff]
      %v1420 = vld [vmem:[%s1410 + $0x48] sm:$0xff]
      %v1421 = vld [vmem:[%s1410 + $0x50] sm:$0xff]
      %v1422 = vld [vmem:[%s1410 + $0x58] sm:$0xff]
      %v1423 = vld [vmem:[%s1410 + $0x60] sm:$0xff]
      %v1424 = vld [vmem:[%s1410 + $0x68] sm:$0xff]
      %v1425 = vld [vmem:[%s1410 + $0x70] sm:$0xff]
      %v1426 = vld [vmem:[%s1410 + $0x78] sm:$0xff]
      %1427 = vmatprep.subr.mxu0 0.0
      %1428 = vmatpush1.msra.mxu0 %v1411
      %1429 = vmatprep.subr.mxu0 0.0
      %1430 = vmatpush1.msra.mxu0 %v1412
      %1431 = vmatprep.subr.mxu0 0.0
      %1432 = vmatpush1.msra.mxu0 %v1413
      %1433 = vmatprep.subr.mxu0 0.0
      %1434 = vmatpush1.msra.mxu0 %v1414
      %1435 = vmatprep.subr.mxu0 0.0
      %1436 = vmatpush1.msra.mxu0 %v1415
      %1437 = vmatprep.subr.mxu0 0.0
      %1438 = vmatpush1.msra.mxu0 %v1416
      %1439 = vmatprep.subr.mxu0 0.0
      %1440 = vmatpush1.msra.mxu0 %v1417
      %1441 = vmatprep.subr.mxu0 0.0
      %1442 = vmatpush1.msra.mxu0 %v1418
      %1443 = vmatprep.subr.mxu0 0.0
      %1444 = vmatpush1.msra.mxu0 %v1419
      %1445 = vmatprep.subr.mxu0 0.0
      %1446 = vmatpush1.msra.mxu0 %v1420
      %1447 = vmatprep.subr.mxu0 0.0
      %1448 = vmatpush1.msra.mxu0 %v1421
      %1449 = vmatprep.subr.mxu0 0.0
      %1450 = vmatpush1.msra.mxu0 %v1422
      %1451 = vmatprep.subr.mxu0 0.0
      %1452 = vmatpush1.msra.mxu0 %v1423
      %1453 = vmatprep.subr.mxu0 0.0
      %1454 = vmatpush1.msra.mxu0 %v1424
      %1455 = vmatprep.subr.mxu0 0.0
      %1456 = vmatpush1.msra.mxu0 %v1425
      %1457 = vmatprep.subr.mxu0 0.0
      %1458 = vmatpush1.msra.mxu0 %v1426
      %1459 = vmatprep.subr.mxu0 0.0
      %1460 = vmatpush1.msra.mxu0 0.0
      %1461 = vmatprep.subr.mxu0 0.0
      %1462 = vmatpush1.msra.mxu0 0.0
      %1463 = vmatprep.subr.mxu0 0.0
      %1464 = vmatpush1.msra.mxu0 0.0
      %1465 = vmatprep.subr.mxu0 0.0
      %1466 = vmatpush1.msra.mxu0 0.0
      %1467 = vmatprep.subr.mxu0 0.0
      %1468 = vmatpush1.msra.mxu0 0.0
      %1469 = vmatprep.subr.mxu0 0.0
      %1470 = vmatpush1.msra.mxu0 0.0
      %1471 = vmatprep.subr.mxu0 0.0
      %1472 = vmatpush1.msra.mxu0 0.0
      %1473 = vmatprep.subr.mxu0 0.0
      %1474 = vmatpush1.msra.mxu0 0.0
      %1475 = vmatprep.subr.mxu0 0.0
      %1476 = vmatpush1.msra.mxu0 0.0
      %1477 = vmatprep.subr.mxu0 0.0
      %1478 = vmatpush1.msra.mxu0 0.0
      %1479 = vmatprep.subr.mxu0 0.0
      %1480 = vmatpush1.msra.mxu0 0.0
      %1481 = vmatprep.subr.mxu0 0.0
      %1482 = vmatpush1.msra.mxu0 0.0
      %1483 = vmatprep.subr.mxu0 0.0
      %1484 = vmatpush1.msra.mxu0 0.0
      %1485 = vmatprep.subr.mxu0 0.0
      %1486 = vmatpush1.msra.mxu0 0.0
      %1487 = vmatprep.subr.mxu0 0.0
      %1488 = vmatpush1.msra.mxu0 0.0
      %1489 = vmatprep.subr.mxu0 0.0
      %1490 = vmatpush1.msra.mxu0 0.0
      %1491 = vmatprep.mubr.f32.mxu0 0.0
      %1492 = vmatmul.mubr.f32.gmra.mrb[0].mxu0 %v460
      %v1493 = vpop.f32.mrb[0].mxu0
      %v1494 = vadd.f32 0.0, %v1493
      %v1495 = vpop.f32.mrb[0].mxu0
      %1496 = vmatprep.mubr.f32.mxu0 0.0
      %1497 = vmatmul.mubr.f32.gmra.mrb[0].mxu0 %v463
      %v1498 = vpop.f32.mrb[0].mxu0
      %v1499 = vadd.f32 0.0, %v1498
      %v1500 = vpop.f32.mrb[0].mxu0
      %1501 = vmatprep.mubr.f32.mxu0 0.0
      %1502 = vmatmul.mubr.f32.gmra.mrb[0].mxu0 %v466
      %v1503 = vpop.f32.mrb[0].mxu0
      %v1504 = vadd.f32 0.0, %v1503
      %v1505 = vpop.f32.mrb[0].mxu0
      %1506 = vmatprep.mubr.f32.mxu0 0.0
      %1507 = vmatmul.mubr.f32.gmra.mrb[0].mxu0 %v469
      %v1508 = vpop.f32.mrb[0].mxu0
      %v1509 = vadd.f32 0.0, %v1508
      %v1510 = vpop.f32.mrb[0].mxu0
      %1511 = vmatprep.mubr.f32.mxu0 0.0
      %1512 = vmatmul.mubr.f32.gmra.mrb[0].mxu0 %v472
      %v1513 = vpop.f32.mrb[0].mxu0
      %v1514 = vadd.f32 0.0, %v1513
      %v1515 = vpop.f32.mrb[0].mxu0
      %1516 = vmatprep.mubr.f32.mxu0 0.0
      %1517 = vmatmul.mubr.f32.gmra.mrb[0].mxu0 %v475
      %v1518 = vpop.f32.mrb[0].mxu0
      %v1519 = vadd.f32 0.0, %v1518
      %v1520 = vpop.f32.mrb[0].mxu0
      %1521 = vmatprep.mubr.f32.mxu0 0.0
      %1522 = vmatmul.mubr.f32.gmra.mrb[0].mxu0 %v1008
      %v1523 = vpop.f32.mrb[0].mxu0
      %v1524 = vadd.f32 0.0, %v1523
      %v1525 = vpop.f32.mrb[0].mxu0
      %1526 = vmatprep.mubr.f32.mxu0 0.0
      %1527 = vmatmul.mubr.f32.gmra.mrb[0].mxu0 %v1408
      %v1528 = vpop.f32.mrb[0].mxu0
      %v1529 = vadd.f32 0.0, %v1528
      %v1530 = vpop.f32.mrb[0].mxu0
      %1531 = vdwg.mxu0
      %v1532 = vadd.f32 %v1396, %v1494
      %v1533 = vadd.f32 %v1397, %v1499
      %v1534 = vadd.f32 %v1398, %v1504
      %v1535 = vadd.f32 %v1399, %v1509
      %v1536 = vadd.f32 %v1400, %v1514
      %v1537 = vadd.f32 %v1401, %v1519
      %v1538 = vadd.f32 %v1402, %v1524
      %v1539 = vadd.f32 %v1403, %v1529
      %v1540 = vrot.slane %v417, 2
      %v1541 = vrot.slane %v418, 2
      %v1542 = vsel %vm711, %v1540, %v1541
      %s1544 = scalar_lea.vmem %s3, 1024
      %v1545 = vld [vmem:[%s1544] sm:$0xff]
      %v1546 = vld [vmem:[%s1544 + $0x8] sm:$0xff]
      %v1547 = vld [vmem:[%s1544 + $0x10] sm:$0xff]
      %v1548 = vld [vmem:[%s1544 + $0x18] sm:$0xff]
      %v1549 = vld [vmem:[%s1544 + $0x20] sm:$0xff]
      %v1550 = vld [vmem:[%s1544 + $0x28] sm:$0xff]
      %v1551 = vld [vmem:[%s1544 + $0x30] sm:$0xff]
      %v1552 = vld [vmem:[%s1544 + $0x38] sm:$0xff]
      %v1553 = vld [vmem:[%s1544 + $0x40] sm:$0xff]
      %v1554 = vld [vmem:[%s1544 + $0x48] sm:$0xff]
      %v1555 = vld [vmem:[%s1544 + $0x50] sm:$0xff]
      %v1556 = vld [vmem:[%s1544 + $0x58] sm:$0xff]
      %v1557 = vld [vmem:[%s1544 + $0x60] sm:$0xff]
      %v1558 = vld [vmem:[%s1544 + $0x68] sm:$0xff]
      %v1559 = vld [vmem:[%s1544 + $0x70] sm:$0xff]
      %v1560 = vld [vmem:[%s1544 + $0x78] sm:$0xff]
      %1561 = vmatprep.subr.mxu0 0.0
      %1562 = vmatpush1.msra.mxu0 %v1545
      %1563 = vmatprep.subr.mxu0 0.0
      %1564 = vmatpush1.msra.mxu0 %v1546
      %1565 = vmatprep.subr.mxu0 0.0
      %1566 = vmatpush1.msra.mxu0 %v1547
      %1567 = vmatprep.subr.mxu0 0.0
      %1568 = vmatpush1.msra.mxu0 %v1548
      %1569 = vmatprep.subr.mxu0 0.0
      %1570 = vmatpush1.msra.mxu0 %v1549
      %1571 = vmatprep.subr.mxu0 0.0
      %1572 = vmatpush1.msra.mxu0 %v1550
      %1573 = vmatprep.subr.mxu0 0.0
      %1574 = vmatpush1.msra.mxu0 %v1551
      %1575 = vmatprep.subr.mxu0 0.0
      %1576 = vmatpush1.msra.mxu0 %v1552
      %1577 = vmatprep.subr.mxu0 0.0
      %1578 = vmatpush1.msra.mxu0 %v1553
      %1579 = vmatprep.subr.mxu0 0.0
      %1580 = vmatpush1.msra.mxu0 %v1554
      %1581 = vmatprep.subr.mxu0 0.0
      %1582 = vmatpush1.msra.mxu0 %v1555
      %1583 = vmatprep.subr.mxu0 0.0
      %1584 = vmatpush1.msra.mxu0 %v1556
      %1585 = vmatprep.subr.mxu0 0.0
      %1586 = vmatpush1.msra.mxu0 %v1557
      %1587 = vmatprep.subr.mxu0 0.0
      %1588 = vmatpush1.msra.mxu0 %v1558
      %1589 = vmatprep.subr.mxu0 0.0
      %1590 = vmatpush1.msra.mxu0 %v1559
      %1591 = vmatprep.subr.mxu0 0.0
      %1592 = vmatpush1.msra.mxu0 %v1560
      %1593 = vmatprep.subr.mxu0 0.0
      %1594 = vmatpush1.msra.mxu0 0.0
      %1595 = vmatprep.subr.mxu0 0.0
      %1596 = vmatpush1.msra.mxu0 0.0
      %1597 = vmatprep.subr.mxu0 0.0
      %1598 = vmatpush1.msra.mxu0 0.0
      %1599 = vmatprep.subr.mxu0 0.0
      %1600 = vmatpush1.msra.mxu0 0.0
      %1601 = vmatprep.subr.mxu0 0.0
      %1602 = vmatpush1.msra.mxu0 0.0
      %1603 = vmatprep.subr.mxu0 0.0
      %1604 = vmatpush1.msra.mxu0 0.0
      %1605 = vmatprep.subr.mxu0 0.0
      %1606 = vmatpush1.msra.mxu0 0.0
      %1607 = vmatprep.subr.mxu0 0.0
      %1608 = vmatpush1.msra.mxu0 0.0
      %1609 = vmatprep.subr.mxu0 0.0
      %1610 = vmatpush1.msra.mxu0 0.0
      %1611 = vmatprep.subr.mxu0 0.0
      %1612 = vmatpush1.msra.mxu0 0.0
      %1613 = vmatprep.subr.mxu0 0.0
      %1614 = vmatpush1.msra.mxu0 0.0
      %1615 = vmatprep.subr.mxu0 0.0
      %1616 = vmatpush1.msra.mxu0 0.0
      %1617 = vmatprep.subr.mxu0 0.0
      %1618 = vmatpush1.msra.mxu0 0.0
      %1619 = vmatprep.subr.mxu0 0.0
      %1620 = vmatpush1.msra.mxu0 0.0
      %1621 = vmatprep.subr.mxu0 0.0
      %1622 = vmatpush1.msra.mxu0 0.0
      %1623 = vmatprep.subr.mxu0 0.0
      %1624 = vmatpush1.msra.mxu0 0.0
      %1625 = vmatprep.mubr.f32.mxu0 0.0
      %1626 = vmatmul.mubr.f32.gmra.mrb[0].mxu0 %v720
      %v1627 = vpop.f32.mrb[0].mxu0
      %v1628 = vadd.f32 0.0, %v1627
      %v1629 = vpop.f32.mrb[0].mxu0
      %1630 = vmatprep.mubr.f32.mxu0 0.0
      %1631 = vmatmul.mubr.f32.gmra.mrb[0].mxu0 %v723
      %v1632 = vpop.f32.mrb[0].mxu0
      %v1633 = vadd.f32 0.0, %v1632
      %v1634 = vpop.f32.mrb[0].mxu0
      %1635 = vmatprep.mubr.f32.mxu0 0.0
      %1636 = vmatmul.mubr.f32.gmra.mrb[0].mxu0 %v726
      %v1637 = vpop.f32.mrb[0].mxu0
      %v1638 = vadd.f32 0.0, %v1637
      %v1639 = vpop.f32.mrb[0].mxu0
      %1640 = vmatprep.mubr.f32.mxu0 0.0
      %1641 = vmatmul.mubr.f32.gmra.mrb[0].mxu0 %v729
      %v1642 = vpop.f32.mrb[0].mxu0
      %v1643 = vadd.f32 0.0, %v1642
      %v1644 = vpop.f32.mrb[0].mxu0
      %1645 = vmatprep.mubr.f32.mxu0 0.0
      %1646 = vmatmul.mubr.f32.gmra.mrb[0].mxu0 %v732
      %v1647 = vpop.f32.mrb[0].mxu0
      %v1648 = vadd.f32 0.0, %v1647
      %v1649 = vpop.f32.mrb[0].mxu0
      %1650 = vmatprep.mubr.f32.mxu0 0.0
      %1651 = vmatmul.mubr.f32.gmra.mrb[0].mxu0 %v735
      %v1652 = vpop.f32.mrb[0].mxu0
      %v1653 = vadd.f32 0.0, %v1652
      %v1654 = vpop.f32.mrb[0].mxu0
      %1655 = vmatprep.mubr.f32.mxu0 0.0
      %1656 = vmatmul.mubr.f32.gmra.mrb[0].mxu0 %v1142
      %v1657 = vpop.f32.mrb[0].mxu0
      %v1658 = vadd.f32 0.0, %v1657
      %v1659 = vpop.f32.mrb[0].mxu0
      %1660 = vmatprep.mubr.f32.mxu0 0.0
      %1661 = vmatmul.mubr.f32.gmra.mrb[0].mxu0 %v1542
      %v1662 = vpop.f32.mrb[0].mxu0
      %v1663 = vadd.f32 0.0, %v1662
      %v1664 = vpop.f32.mrb[0].mxu0
      %1665 = vdwg.mxu0
      %v1666 = vadd.f32 %v1532, %v1628
      %v1667 = vadd.f32 %v1533, %v1633
      %v1668 = vadd.f32 %v1534, %v1638
      %v1669 = vadd.f32 %v1535, %v1643
      %v1670 = vadd.f32 %v1536, %v1648
      %v1671 = vadd.f32 %v1537, %v1653
      %v1672 = vadd.f32 %v1538, %v1658
      %v1673 = vadd.f32 %v1539, %v1663
      %1674 = vst [vmem:[%s390] sm:$0xff] %v1666
      %1675 = vst [vmem:[%s390 + $0x8] sm:$0xff] %v1667
      %1676 = vst [vmem:[%s390 + $0x10] sm:$0xff] %v1668
      %1677 = vst [vmem:[%s390 + $0x18] sm:$0xff] %v1669
      %1678 = vst [vmem:[%s390 + $0x20] sm:$0xff] %v1670
      %1679 = vst [vmem:[%s390 + $0x28] sm:$0xff] %v1671
      %1680 = vst [vmem:[%s390 + $0x30] sm:$0xff] %v1672
      %1681 = vst [vmem:[%s390 + $0x38] sm:$0xff] %v1673
      %v1682 = vadd.f32 %v1666, %v1667
      %v1683 = vadd.f32 %v1682, %v1668
      %v1684 = vadd.f32 %v1683, %v1669
      %v1685 = vadd.f32 %v1684, %v1670
      %v1686 = vadd.f32 %v1685, %v1671
      %v1687 = vadd.f32 %v1686, %v1672
      %v1688 = vadd.f32 %v1687, %v1673
      %v1689 = vrot.slane %v1688, 4
      %v1690 = vadd.f32 %v1688, %v1689
      %v1691 = vrot.slane %v1690, 2
      %v1692 = vadd.f32 %v1690, %v1691
      %v1693 = vrot.slane %v1692, 1
      %v1694 = vadd.f32 %v1692, %v1693
      %v1695 = vmul.f32 %v1666, %v1666
      %v1696 = vmul.f32 %v1667, %v1667
      %v1697 = vmul.f32 %v1668, %v1668
      %v1698 = vmul.f32 %v1669, %v1669
      %v1699 = vmul.f32 %v1670, %v1670
      %v1700 = vmul.f32 %v1671, %v1671
      %v1701 = vmul.f32 %v1672, %v1672
      %v1702 = vmul.f32 %v1673, %v1673
      %v1703 = vadd.f32 %v1695, %v1696
      %v1704 = vadd.f32 %v1703, %v1697
      %v1705 = vadd.f32 %v1704, %v1698
      %v1706 = vadd.f32 %v1705, %v1699
      %v1707 = vadd.f32 %v1706, %v1700
      %v1708 = vadd.f32 %v1707, %v1701
      %v1709 = vadd.f32 %v1708, %v1702
      %v1710 = vrot.slane %v1709, 4
      %v1711 = vadd.f32 %v1709, %v1710
      %v1712 = vrot.slane %v1711, 2
      %v1713 = vadd.f32 %v1711, %v1712
      %v1714 = vrot.slane %v1713, 1
      %v1715 = vadd.f32 %v1713, %v1714
      %vm1716 = vcmask 1040384
      %v1717 = vsel %vm1716, %v1694, %v1715
      %1718 = vst [vmem:[%s397] sm:$0x3] %v1717
      %s1719 = sadd.s32 %s21, %s22
      %s1720 = smul.u32 8, %s1719
      %p1721 = scmp.lt.s32.totalorder %s1720, 15
      %s1722 = scalar_select %p1721, %s1720, 15
      %s1723 = smul.addr %s1722, 8
      %s1724 = scalar_lea.vmem %s4, %s1723
      %s1725 = sadd.s32 %s21, %s22
      %p1726 = scmp.lt.s32.totalorder %s1725, 1
      %s1727 = scalar_select %p1726, %s1725, 1
      %s1728 = smul.addr %s1727, 2
      %s1729 = scalar_lea.vmem %s5, %s1728
      // Predicated region
      $region37: #{down_block_forward.6} parent=35 // pred_check
        %p1730 = pneg %p162
      $region38: #{down_block_forward.6} parent=35 // pred_check_branch
        %1732 = sbr.rel (%p1730) target = $region40
      $region39: #{down_block_forward.6} parent=35 // pred_region
        %s1733 = sadd.s32 %s21, %s22
        %s1734 = smul.u32 8, %s1733
      $region40: #{down_block_forward.6} parent=35 // pred_fallthru
        _
      // Predicated region
      $region41: #{down_block_forward.6} parent=35 // pred_check
        %p1735 = pneg %p190
      $region42: #{down_block_forward.6} parent=35 // pred_check_branch
        %1737 = sbr.rel (%p1735) target = $region44
      $region43: #{down_block_forward.6} parent=35 // pred_region
        %s1738 = sadd.s32 %s21, %s22
      $region44: #{down_block_forward.6} parent=35 // pred_fallthru
        _
    $region36: #{down_block_forward.6} parent=5 // pred_fallthru
      _
    %p1739 = scmp.le.s32.totalorder 2, %s12
    // Predicated region
    $region45: #{down_block_forward.6} parent=5 // pred_check
      %p1740 = pneg %p1739
    $region46: #{down_block_forward.6} parent=5 // pred_check_branch
      %1742 = sbr.rel (%p1740) target = $region48
    $region47: #{down_block_forward.6} parent=5 // pred_region
      %s1743 = ssub.s32 %s12, 2
      // Predicated region
      $region49: #{down_block_forward.6} parent=47 // pred_check
        %p1744 = pneg %p168
      $region50: #{down_block_forward.6} parent=47 // pred_check_branch
        %1746 = sbr.rel (%p1744) target = $region52
      $region51: #{down_block_forward.6} parent=47 // pred_region
        %s1747 = sadd.s32 %s23, %s24
        %s1748 = smul.u32 8, %s1747
        %p1749 = scmp.lt.s32.totalorder %s1748, 15
        %s1750 = scalar_select %p1749, %s1748, 15
        %s1751 = smul.addr %s1750, 8
        %s1752 = scalar_lea.vmem %s4, %s1751
      $region52: #{down_block_forward.6} parent=47 // pred_fallthru
        _
      // Predicated region
      $region53: #{down_block_forward.6} parent=47 // pred_check
        %p1753 = pneg %p196
      $region54: #{down_block_forward.6} parent=47 // pred_check_branch
        %1755 = sbr.rel (%p1753) target = $region56
      $region55: #{down_block_forward.6} parent=47 // pred_region
        %s1756 = sadd.s32 %s23, %s24
        %p1757 = scmp.lt.s32.totalorder %s1756, 1
        %s1758 = scalar_select %p1757, %s1756, 1
        %s1759 = smul.addr %s1758, 2
        %s1760 = scalar_lea.vmem %s5, %s1759
      $region56: #{down_block_forward.6} parent=47 // pred_fallthru
        _
    $region48: #{down_block_forward.6} parent=5 // pred_fallthru
      _
  $region6: #{down_block_forward.6} parent=0 // loop_footer
    %s16 = sadd.s32 1, %s12
  $region7: #{down_block_forward.6} parent=0 // loop_footer_branch
    %11 = sbr.rel target = $region3
  $region8: #{down_block_forward.6} parent=0 // loop_exit
    _

</llo_original>
